<compile_context>
chip_gen: v7x
topology: tpu7x:2x2x1
jax: 0.10.0
libtpu: 0.0.40
codegen_flags: <defaults>
</compile_context>

<pallas_src>
import functools

import jax
import jax.numpy as jnp
from jax import lax
from jax.experimental import pallas as pl
from jax.experimental.pallas import tpu as pltpu

# Make the pure-JAX reference matmuls f32-accurate so the f32 kernel path can be
# checked against it tightly.
jax.config.update("jax_default_matmul_precision", "highest")


# ----------------------------------------------------------------------------- helpers
def _layer_norm(x, eps=1e-5):
    mu = jnp.mean(x, axis=-1, keepdims=True)
    xc = x - mu
    var = jnp.mean(xc * xc, axis=-1, keepdims=True)
    return xc * lax.rsqrt(var + eps)


def _pick_tq(n):
    """Largest small divisor of n: query rows per kernel-1 grid step."""
    for t in (16, 8, 4, 2, 1):
        if n % t == 0:
            return min(t, n)
    return 1


def _vmem_limit_bytes():
    """Explicit scoped-VMEM budget (review: defaults are 16/32 MiB on v5e/v6e)."""
    cap = 64 << 20  # conservative fallback (v7x physical)
    try:
        info = pltpu.get_tpu_info()
        cap = int(getattr(info, "vmem_capacity_bytes", cap))
    except Exception:
        pass
    return min(100 << 20, int(cap * 0.85))


# ----------------------------------------------------------------------------- kernel 1
def _pair_logits_kernel(pair_cond_ref, ln_w_ref, ln_b_ref, w_ref, out_ref, *,
                        matmul_dtype):
    """For Tq query rows: pa = LN(pair_cond); out[:, rows] = W_all @ pa^T.

    Output is written already in (B*H, flattened (q, key)) layout -> no XLA
    transpose and no extra HBM round trip downstream.
    """
    tq, n, p = pair_cond_ref.shape
    x = pair_cond_ref[...].reshape(tq * n, p)                       # collapse major dims
    pa = _layer_norm(x) * ln_w_ref[...] + ln_b_ref[...]             # (Tq*N, P) f32
    res = lax.dot_general(w_ref[...], pa.astype(matmul_dtype),
                          (((1,), (1,)), ((), ())),
                          preferred_element_type=jnp.float32)       # (B*H, Tq*N)
    out_ref[...] = res.astype(out_ref.dtype)


# ----------------------------------------------------------------------------- kernel 2
def _dt_block_kernel(
    # resident inputs
    act_ref, sc_ref, maskb_ref,
    # per-block blocked inputs
    pair_ref, aln_w_ref, aln_b_ref, qkvg_w_ref, qkvg_b_ref, a_out_w_ref,
    azc_w_ref, azc_b_ref, t1_w_ref, t_out_w_ref,
    # output (carried activation) + scratch
    out_ref, sc_ln_scr,
    *, num_head, head_dim, c_act, matmul_dtype):
    f32 = jnp.float32
    H, Dh, D = num_head, head_dim, c_act
    b = pl.program_id(0)
    cast = lambda t: t.astype(matmul_dtype)

    @pl.when(b == 0)
    def _init():
        out_ref[...] = act_ref[...]                     # seed the activation carry
        sc_ln_scr[...] = _layer_norm(sc_ref[...])       # block-invariant LN(single_cond)

    act = out_ref[...]                                  # (N, D) running activation
    sc = sc_ref[...]                                    # (N, C) raw single_cond
    sc_ln = sc_ln_scr[...]                              # (N, C)
    N = act.shape[0]
    key_bias = (maskb_ref[...] - 1.0) * 1e9             # (1,1,N): 0 valid / -1e9 masked

    # ---- conditioning-only work (independent of act) ----
    # adaptive-LN scale|bias for attention AND transition in one matmul; the
    # cond-LN diagonal is already folded into aln_w at pack time.
    sb = jnp.dot(cast(sc_ln), aln_w_ref[0],
                 preferred_element_type=f32) + aln_b_ref[0]              # (N, 4D)
    gates = jax.nn.sigmoid(
        jnp.dot(cast(sc), azc_w_ref[0],
                preferred_element_type=f32) + azc_b_ref[0])              # (N, 2D)
    attn_gate, trans_gate = gates[:, :D], gates[:, D:]

    # ---- SelfAttention ----
    xa = jax.nn.sigmoid(sb[:, :D]) * _layer_norm(act) + sb[:, D:2 * D]   # adaptive LN
    proj = jnp.dot(cast(xa), qkvg_w_ref[0],
                   preferred_element_type=f32) + qkvg_b_ref[0]           # (N, 4D) = q|k|v|g

    def heads(slab):                      # (N, D) head-major slab -> (H, N, Dh)
        return jnp.swapaxes(slab.reshape(N, H, Dh), 0, 1)

    q3 = heads(proj[:, :D])               # q_scale / q_bias folded into packed weights
    k3 = heads(proj[:, D:2 * D])
    v3 = heads(proj[:, 2 * D:3 * D])

    logits = jnp.einsum('hqd,hkd->hqk', cast(q3), cast(k3),
                        preferred_element_type=f32)                      # (H, N, N)
    logits = logits + pair_ref[...].astype(f32) + key_bias
    logits = logits - jnp.max(logits, axis=-1, keepdims=True)
    p = jnp.exp(logits)
    # reciprocal-multiply: the divide only touches the (H, N, 1) sums.
    probs = p * (1.0 / jnp.sum(p, axis=-1, keepdims=True))
    wa3 = jnp.einsum('hqk,hkd->hqd', cast(probs), cast(v3),
                     preferred_element_type=f32)                         # (H, N, Dh)
    wa = jnp.swapaxes(wa3, 0, 1).reshape(N, D)                           # merge heads
    wa = wa * jax.nn.sigmoid(proj[:, 3 * D:])                            # gating_query
    attn_out = jnp.dot(cast(wa), a_out_w_ref[0],
                       preferred_element_type=f32)                       # one K=D matmul
    act = act + attn_gate * attn_out                                     # AdaLNZero + residual

    # ---- DiffusionTransition (SwiGLU) ----
    xt = jax.nn.sigmoid(sb[:, 2 * D:3 * D]) * _layer_norm(act) + sb[:, 3 * D:]
    glu = jnp.dot(cast(xt), t1_w_ref[0], preferred_element_type=f32)     # (N, 2*f*D)
    half = glu.shape[-1] // 2
    cgl = jax.nn.silu(glu[:, :half]) * glu[:, half:]
    t_out = jnp.dot(cast(cgl), t_out_w_ref[0], preferred_element_type=f32)
    act = act + trans_gate * t_out                                       # AdaLNZero + residual

    out_ref[...] = act


# ----------------------------------------------------------------------------- packing
def _pack_block_params(blocks, H, Dh, D, matmul_dtype):
    """PyTorch-layout per-block params -> fused [in,out] matrices, stacked over blocks.

    Matmul weights are pre-cast to matmul_dtype (halves per-block weight DMA and
    double-buffer VMEM in bf16 production); biases stay f32 (post-matmul adds).
    """
    qscale = float(Dh) ** -0.5
    zD = jnp.zeros((D,), jnp.float32)
    wc = lambda w: w.astype(matmul_dtype)

    def per_block(bp):
        A, T = bp["attn"], bp["trans"]
        cln_a = A["aln"]["sc_ln_w"][:, None]                      # (C, 1)
        cln_t = T["aln"]["sc_ln_w"][:, None]
        # cond-LN diagonal folded into the adaptive-LN weights; attn+trans fused.
        aln_w = jnp.concatenate(
            [cln_a * A["aln"]["scale_w"].T, cln_a * A["aln"]["bias_w"].T,
             cln_t * T["aln"]["scale_w"].T, cln_t * T["aln"]["bias_w"].T], axis=1)  # (C,4D)
        aln_b = jnp.concatenate([A["aln"]["scale_b"], zD,
                                 T["aln"]["scale_b"], zD])[None]                    # (1,4D)
        qkvg_w = jnp.concatenate([A["q_w"].T * qscale, A["k_w"].T,
                                  A["v_w"].T, A["gate_w"].T], axis=1)               # (D,4D)
        qkvg_b = jnp.concatenate([A["q_b"] * qscale,
                                  jnp.zeros((3 * D,), jnp.float32)])[None]          # (1,4D)
        a_out_w = A["t2_w"].T                                                       # (D,D)
        azc_w = jnp.concatenate([A["cond_w"].T, T["cond_w"].T], axis=1)             # (C,2D)
        azc_b = jnp.concatenate([A["cond_b"], T["cond_b"]])[None]                   # (1,2D)
        t1_w = T["t1_w"].T                                                          # (D,2fD)
        t_out_w = T["t2_w"].T                                                       # (fD,D)
        return (wc(aln_w), aln_b, wc(qkvg_w), qkvg_b, wc(a_out_w),
                wc(azc_w), azc_b, wc(t1_w), wc(t_out_w))

    packed = [per_block(bp) for bp in blocks]
    return [jnp.stack(ws, axis=0) for ws in zip(*packed)]


# ----------------------------------------------------------------------------- wrapper
def diffusion_transformer_pallas(act, mask, single_cond, pair_cond, params,
                                 num_head, super_block_size,
                                 matmul_dtype=jnp.bfloat16,
                                 pair_dtype=jnp.bfloat16,
                                 tq=None):
    N, D = act.shape
    C = single_cond.shape[-1]
    P = pair_cond.shape[-1]
    H = num_head
    Dh = D // H
    blocks = params["blocks"]
    B = len(blocks)
    BH = B * H
    assert D % H == 0 and B % super_block_size == 0

    vmem_limit = _vmem_limit_bytes()

    # ---- kernel 1: pair LayerNorm + all pair-logit projections, directly (B*H, N, N) ----
    pair_ln_w = params["pair_ln_w"].reshape(1, P)
    pair_ln_b = params["pair_ln_b"].reshape(1, P)
    w_all = jnp.concatenate(params["pair_proj_w"], axis=0).astype(matmul_dtype)  # (B*H, P)

    if tq is None:
        tq = _pick_tq(N)
    assert N % tq == 0

    k1 = functools.partial(_pair_logits_kernel, matmul_dtype=matmul_dtype)
    pair_flat = pl.pallas_call(
        k1,
        out_shape=jax.ShapeDtypeStruct((BH, N * N), pair_dtype),
        grid=(N // tq,),
        in_specs=[
            pl.BlockSpec((tq, N, P), lambda q: (q, 0, 0)),
            pl.BlockSpec((1, P), lambda q: (0, 0)),
            pl.BlockSpec((1, P), lambda q: (0, 0)),
            pl.BlockSpec((BH, P), lambda q: (0, 0)),
        ],
        out_specs=pl.BlockSpec((BH, tq * N), lambda q: (0, q)),
        compiler_params=pltpu.CompilerParams(
            dimension_semantics=("parallel",), vmem_limit_bytes=vmem_limit),
    )(pair_cond, pair_ln_w, pair_ln_b, w_all)
    # free metadata reshape (row-major contiguous): (B*H, N*N) -> (B*H, N, N)
    pair_all = pair_flat.reshape(BH, N, N)

    # ---- kernel 2: the full residual stack, one grid step per block ----
    packed = _pack_block_params(blocks, H, Dh, D, matmul_dtype)
    mask_f = mask.astype(jnp.float32).reshape(1, 1, N)

    def resident(shape):
        nd = len(shape)
        return pl.BlockSpec(tuple(shape), lambda b, _n=nd: (0,) * _n)

    def per_block(shape):
        nd = len(shape)
        return pl.BlockSpec((1,) + tuple(shape), lambda b, _n=nd: (b,) + (0,) * _n)

    in_specs = [
        resident((N, D)),                                   # act (initial value)
        resident((N, C)),                                   # single_cond
        resident((1, 1, N)),                                # key mask (float)
        pl.BlockSpec((H, N, N), lambda b: (b, 0, 0)),       # pair logits for block b
    ] + [per_block(a.shape[1:]) for a in packed]            # stacked per-block weights

    kernel = functools.partial(_dt_block_kernel, num_head=H, head_dim=Dh,
                               c_act=D, matmul_dtype=matmul_dtype)
    out = pl.pallas_call(
        kernel,
        out_shape=jax.ShapeDtypeStruct((N, D), jnp.float32),
        grid=(B,),
        in_specs=in_specs,
        out_specs=pl.BlockSpec((N, D), lambda b: (0, 0)),   # revisited carry block
        scratch_shapes=[pltpu.VMEM((N, C), jnp.float32)],   # LN(single_cond) cache
        compiler_params=pltpu.CompilerParams(
            dimension_semantics=("arbitrary",), vmem_limit_bytes=vmem_limit),
    )(act, single_cond, mask_f, pair_all, *packed)
    return out


# ----------------------------------------------------------------------------- reference
def _ref_layer_norm(x, w=None, b=None, eps=1e-5):
    mu = jnp.mean(x, axis=-1, keepdims=True)
    var = jnp.mean(jnp.square(x - mu), axis=-1, keepdims=True)
    y = (x - mu) * lax.rsqrt(var + eps)
    if w is not None:
        y = y * w
    if b is not None:
        y = y + b
    return y


def _ref_adaptive_ln(x, sc, p):
    xn = _ref_layer_norm(x)
    scn = _ref_layer_norm(sc, p["sc_ln_w"])
    scale = scn @ p["scale_w"].T + p["scale_b"]
    bias = scn @ p["bias_w"].T
    return jax.nn.sigmoid(scale) * xn + bias


def _ref_self_attention(act, mask, pair_logits, sc, p, H):
    N, D = act.shape
    Dh = D // H
    x = _ref_adaptive_ln(act, sc, p["aln"])
    q = (x @ p["q_w"].T + p["q_b"]) * (float(Dh) ** -0.5)
    k = x @ p["k_w"].T
    v = x @ p["v_w"].T
    q = q.reshape(N, H, Dh).transpose(1, 0, 2)
    k = k.reshape(N, H, Dh).transpose(1, 0, 2)
    v = v.reshape(N, H, Dh).transpose(1, 0, 2)
    logits = jnp.einsum('hqd,hkd->hqk', q, k) + pair_logits
    logits = logits + (mask.astype(jnp.float32) - 1.0)[None, None, :] * 1e9
    w = jax.nn.softmax(logits, axis=-1)
    wa = jnp.einsum('hqk,hkd->hqd', w, v).transpose(1, 0, 2).reshape(N, D)
    wa = wa * jax.nn.sigmoid(x @ p["gate_w"].T)
    out = wa @ p["t2_w"].T
    cond = sc @ p["cond_w"].T + p["cond_b"]
    return jax.nn.sigmoid(cond) * out


def _ref_transition(act, sc, p):
    x = _ref_adaptive_ln(act, sc, p["aln"])
    y = x @ p["t1_w"].T
    a, b = jnp.split(y, 2, axis=-1)
    c = jax.nn.silu(a) * b
    out = c @ p["t2_w"].T
    cond = sc @ p["cond_w"].T + p["cond_b"]
    return jax.nn.sigmoid(cond) * out


def diffusion_transformer_ref(act, mask, single_cond, pair_cond, params, H, sbs):
    N = act.shape[0]
    pair_act = _ref_layer_norm(pair_cond, params["pair_ln_w"], params["pair_ln_b"])
    num_blocks = len(params["blocks"])
    for sb in range(num_blocks // sbs):
        proj = jnp.einsum('nsp,op->nso', pair_act, params["pair_proj_w"][sb])
        plog = proj.reshape(N, N, sbs, H).transpose(2, 3, 0, 1)     # (sbs, H, N, N)
        for j in range(sbs):
            bp = params["blocks"][sb * sbs + j]
            act = act + _ref_self_attention(act, mask, plog[j], single_cond, bp["attn"], H)
            act = act + _ref_transition(act, single_cond, bp["trans"])
    return act


# ----------------------------------------------------------------------------- params
def make_params(key, num_blocks, D, C, P, H, super_block_size, factor=2):
    """Deterministic synthetic parameters in PyTorch layout (Linear weight = (out, in))."""
    keys = iter(jax.random.split(key, 1024))

    def nrm(shape, s=0.15):
        return (s * jax.random.normal(next(keys), shape)).astype(jnp.float32)

    def ln_w(n):
        return (1.0 + 0.1 * jax.random.normal(next(keys), (n,))).astype(jnp.float32)

    def aln_params():
        return {"sc_ln_w": ln_w(C), "scale_w": nrm((D, C)),
                "scale_b": nrm((D,), 0.1), "bias_w": nrm((D, C))}

    blocks = []
    for _ in range(num_blocks):
        attn = {
            "aln": aln_params(),
            "q_w": nrm((D, D)), "q_b": nrm((D,), 0.1),
            "k_w": nrm((D, D)), "v_w": nrm((D, D)), "gate_w": nrm((D, D)),
            "t2_w": nrm((D, D)),
            "cond_w": nrm((D, C)), "cond_b": nrm((D,), 0.1),
        }
        trans = {
            "aln": aln_params(),
            "t1_w": nrm((2 * factor * D, D)),
            "t2_w": nrm((D, factor * D)),
            "cond_w": nrm((D, C)), "cond_b": nrm((D,), 0.1),
        }
        blocks.append({"attn": attn, "trans": trans})

    return {
        "blocks": blocks,
        "pair_ln_w": ln_w(P),
        "pair_ln_b": nrm((P,), 0.1),
        "pair_proj_w": [nrm((super_block_size * H, P))
                        for _ in range(num_blocks // super_block_size)],
    }


# ----------------------------------------------------------------------------- test
if __name__ == "__main__":
    # small config: tokens=16, c_act=64, c_single_cond=32, c_pair_cond=16,
    # num_head=4, num_blocks=4, super_block_size=2
    N, D, C, P, H = 16, 64, 32, 16, 4
    num_blocks, sbs = 4, 2

    key = jax.random.PRNGKey(0)
    k = jax.random.split(key, 8)
    act = jax.random.normal(k[0], (N, D), jnp.float32)
    mask = jax.random.bernoulli(k[1], 0.85, (N,)).at[0].set(True)   # key mask, >=1 valid key
    single_cond = jax.random.normal(k[2], (N, C), jnp.float32)
    pair_cond = jax.random.normal(k[3], (N, N, P), jnp.float32)
    params = make_params(k[4], num_blocks, D, C, P, H, sbs)

    ref = diffusion_transformer_ref(act, mask, single_cond, pair_cond,
                                    params, H, sbs)
    ref = jax.block_until_ready(ref)

    # exact-precision path (tight correctness check)
    out_f32 = diffusion_transformer_pallas(act, mask, single_cond, pair_cond,
                                           params, H, sbs,
                                           matmul_dtype=jnp.float32,
                                           pair_dtype=jnp.float32)
    out_f32 = jax.block_until_ready(out_f32)
    assert out_f32.shape == (N, D)
    max_diff = jnp.max(jnp.abs(out_f32 - ref))
    assert jnp.allclose(out_f32, ref, rtol=2e-3, atol=2e-3), f"f32 max abs diff {max_diff}"

    # production path: bf16 MXU operands + bf16 pair-logit stream (looser check,
    # as expected when the pair bias / weights are stored in bf16)
    out_bf16 = diffusion_transformer_pallas(act, mask, single_cond, pair_cond,
                                            params, H, sbs)   # bf16 defaults
    out_bf16 = jax.block_until_ready(out_bf16)
    assert out_bf16.shape == (N, D)
    rel = jnp.linalg.norm(out_bf16 - ref) / (jnp.linalg.norm(ref) + 1e-8)
    assert rel < 5e-2, f"bf16 relative error {rel}"

    print("KERNEL_OK")
</pallas_src>

<mosaic_0001>
module attributes {stable_mosaic.version = 11 : i64} {
  func.func @_pair_logits_kernel(%arg0: i32, %arg1: memref<16x16x16xf32, #tpu.memory_space<vmem>>, %arg2: memref<1x16xf32, #tpu.memory_space<vmem>>, %arg3: memref<1x16xf32, #tpu.memory_space<vmem>>, %arg4: memref<16x16xf32, #tpu.memory_space<vmem>>, %arg5: memref<16x256xf32, #tpu.memory_space<vmem>>) attributes {dimension_semantics = [#tpu.dimension_semantics<parallel>], iteration_bounds = array<i64: 1>, scalar_prefetch = 0 : i64, scratch_operands = 0 : i64, tpu.core_type = #tpu.core_type<tc>, window_params = [{transform_indices = @transform_0, window_bounds = array<i64: 16, 16, 16>}, {pipeline_mode = #tpu.pipeline_mode<synchronous>, transform_indices = @transform_1, window_bounds = array<i64: 1, 16>}, {pipeline_mode = #tpu.pipeline_mode<synchronous>, transform_indices = @transform_2, window_bounds = array<i64: 1, 16>}, {pipeline_mode = #tpu.pipeline_mode<synchronous>, transform_indices = @transform_3, window_bounds = array<i64: 16, 16>}, {transform_indices = @transform_4, window_bounds = array<i64: 16, 256>}]} {
    %c0 = arith.constant 0 : index
    %c0_0 = arith.constant 0 : index
    %c0_1 = arith.constant 0 : index
    %0 = vector.load %arg1[%c0, %c0_0, %c0_1] : memref<16x16x16xf32, #tpu.memory_space<vmem>>, vector<16x16x16xf32>
    %1 = vector.shape_cast %0 : vector<16x16x16xf32> to vector<256x16xf32>
    %cst = arith.constant dense<0.000000e+00> : vector<256xf32>
    %2 = vector.multi_reduction <add>, %1, %cst [1] : vector<256x16xf32> to vector<256xf32>
    %3 = vector.shape_cast %2 : vector<256xf32> to vector<256x1xf32>
    %cst_2 = arith.constant 1.600000e+01 : f32
    %4 = vector.broadcast %cst_2 : f32 to vector<256x1xf32>
    %5 = arith.divf %3, %4 : vector<256x1xf32>
    %6 = vector.broadcast %5 : vector<256x1xf32> to vector<256x16xf32>
    %7 = arith.subf %1, %6 : vector<256x16xf32>
    %8 = arith.mulf %7, %7 : vector<256x16xf32>
    %cst_3 = arith.constant dense<0.000000e+00> : vector<256xf32>
    %9 = vector.multi_reduction <add>, %8, %cst_3 [1] : vector<256x16xf32> to vector<256xf32>
    %10 = vector.shape_cast %9 : vector<256xf32> to vector<256x1xf32>
    %cst_4 = arith.constant 1.600000e+01 : f32
    %11 = vector.broadcast %cst_4 : f32 to vector<256x1xf32>
    %12 = arith.divf %10, %11 : vector<256x1xf32>
    %cst_5 = arith.constant 9.99999974E-6 : f32
    %13 = vector.broadcast %cst_5 : f32 to vector<256x1xf32>
    %14 = arith.addf %12, %13 : vector<256x1xf32>
    %15 = math.rsqrt %14 : vector<256x1xf32>
    %16 = vector.broadcast %15 : vector<256x1xf32> to vector<256x16xf32>
    %17 = arith.mulf %7, %16 : vector<256x16xf32>
    %c0_6 = arith.constant 0 : index
    %c0_7 = arith.constant 0 : index
    %18 = vector.load %arg2[%c0_6, %c0_7] : memref<1x16xf32, #tpu.memory_space<vmem>>, vector<1x16xf32>
    %19 = vector.broadcast %18 : vector<1x16xf32> to vector<256x16xf32>
    %20 = arith.mulf %17, %19 : vector<256x16xf32>
    %c0_8 = arith.constant 0 : index
    %c0_9 = arith.constant 0 : index
    %21 = vector.load %arg3[%c0_8, %c0_9] : memref<1x16xf32, #tpu.memory_space<vmem>>, vector<1x16xf32>
    %22 = vector.broadcast %21 : vector<1x16xf32> to vector<256x16xf32>
    %23 = arith.addf %20, %22 : vector<256x16xf32>
    %c0_10 = arith.constant 0 : index
    %c0_11 = arith.constant 0 : index
    %24 = vector.load %arg4[%c0_10, %c0_11] : memref<16x16xf32, #tpu.memory_space<vmem>>, vector<16x16xf32>
    %cst_12 = arith.constant dense<0.000000e+00> : vector<16x256xf32>
    %25 = tpu.matmul %24, %23, %cst_12 {dimension_numbers = #tpu.dot_dimension_numbers<[1], [1], [0], [0], [0, 0, 1, 0], [], []>, precision = #tpu.contract_precision<fp32>} : vector<16x16xf32>, vector<256x16xf32>, vector<16x256xf32> -> vector<16x256xf32>
    %c0_13 = arith.constant 0 : index
    %c0_14 = arith.constant 0 : index
    %26 = vector.load %arg5[%c0_13, %c0_14] : memref<16x256xf32, #tpu.memory_space<vmem>>, vector<16x256xf32>
    tpu.vector_store %arg5[%c0_13, %c0_14], %25 {strides = array<i32>} : memref<16x256xf32, #tpu.memory_space<vmem>>, vector<16x256xf32>,
    return
  }
  func.func @transform_0(%arg0: i32) -> (i32, i32, i32) {
    %c0_i32 = arith.constant 0 : i32
    %c0_i32_0 = arith.constant 0 : i32
    %c0_i32_1 = arith.constant 0 : i32
    return %arg0, %c0_i32, %c0_i32_0 : i32, i32, i32
  }
  func.func @transform_1(%arg0: i32) -> (i32, i32) {
    %c0_i32 = arith.constant 0 : i32
    %c0_i32_0 = arith.constant 0 : i32
    %c0_i32_1 = arith.constant 0 : i32
    return %c0_i32, %c0_i32_0 : i32, i32
  }
  func.func @transform_2(%arg0: i32) -> (i32, i32) {
    %c0_i32 = arith.constant 0 : i32
    %c0_i32_0 = arith.constant 0 : i32
    %c0_i32_1 = arith.constant 0 : i32
    return %c0_i32, %c0_i32_0 : i32, i32
  }
  func.func @transform_3(%arg0: i32) -> (i32, i32) {
    %c0_i32 = arith.constant 0 : i32
    %c0_i32_0 = arith.constant 0 : i32
    %c0_i32_1 = arith.constant 0 : i32
    return %c0_i32, %c0_i32_0 : i32, i32
  }
  func.func @transform_4(%arg0: i32) -> (i32, i32) {
    %c0_i32 = arith.constant 0 : i32
    %c0_i32_0 = arith.constant 0 : i32
    return %c0_i32, %arg0 : i32, i32
  }
}

</mosaic_0001>

<llo_original>
// kernel: tpu_custom_call.1
$region0: #{tpu_custom_call.1}
  #allocation0 [shape = 'u32[]', space=smem, size = 0x4, offset = 0x4, fixed_abs, tag = 'smem constant byte address 0x4 - core index']
  #allocation1 [shape = 'u32[144,128]{1,0:T(1,128)}', space=vmem, size = 0x12000, scoped, tag = 'internal scratch']
  %s0 = inlined_call_operand.hbm [shape: f32[16,16,16], index: 0, kind: input, shape index: {}]
  %s1 = inlined_call_operand.vmem [shape: f32[1,16], index: 1, kind: input, shape index: {}]
  %s2 = inlined_call_operand.vmem [shape: f32[1,16], index: 2, kind: input, shape index: {}]
  %s3 = inlined_call_operand.hbm [shape: f32[16,16], index: 3, kind: input, shape index: {}]
  %s4 = inlined_call_operand.hbm [shape: f32[16,256], index: 4, kind: output, shape index: {}]
  %s5 = sld [smem:[#allocation0]]
  $region34: #{tpu_custom_call.1} parent=0
    _
  %s7 = ssub.s32 1, %s5
  %s8 = scalar_select 0, %s7, %s5
  $region1: #{tpu_custom_call.1} parent=0
    #allocation2 [shape = 'u8[131072]{0}', space=vmem, size = 0x20000, scoped, tag = 'input window, operand 0, single buffered']
    #allocation3 [shape = 's32[1]{0}', space=sflag, size = 0x4, scoped, tag = 'scoped memory for tpu_custom_call.1']
    #allocation4 [shape = 's32[1]{0}', space=sflag, size = 0x4, scoped, tag = 'scoped memory for tpu_custom_call.1']
    #allocation5 [shape = 'u8[8192]{0}', space=vmem, size = 0x2000, scoped, tag = 'input window, operand 3, single buffered']
    #allocation6 [shape = 's32[1]{0}', space=sflag, size = 0x4, scoped, tag = 'scoped memory for tpu_custom_call.1']
    #allocation7 [shape = 'u8[16384]{0}', space=vmem, size = 0x4000, scoped, tag = 'output window, operand 0, single buffered']
    %9 = vsyncpa [#allocation3], 0
    %10 = vsyncpa [#allocation6], 0
    %11 = vsyncpa [#allocation4], 0
    // Predicated region
    $region2: #{tpu_custom_call.1} parent=1 // pred_check
      _
    $region3: #{tpu_custom_call.1} parent=1 // pred_check_branch
      %13 = sbr.rel (0) target = $region5
    $region4: #{tpu_custom_call.1} parent=1 // pred_region
      %s15 = ssub.s32 4096, 4096
      %16 = vsyncadd [#allocation3], %s15
      %s17 = sshll.u32 [#allocation2], 4
      %s18 = int_to_ptr.vmem [resolvable:$true] %s17
      %23 = dma.hbm_to_vmem [thread:$0]  %s0, 4096, %s18, [#allocation3], 128, 128, 8
    $region5: #{tpu_custom_call.1} parent=1 // pred_fallthru
      _
    // Predicated region
    $region6: #{tpu_custom_call.1} parent=1 // pred_check
      _
    $region7: #{tpu_custom_call.1} parent=1 // pred_check_branch
      %25 = sbr.rel (0) target = $region9
    $region8: #{tpu_custom_call.1} parent=1 // pred_region
      _
    $region9: #{tpu_custom_call.1} parent=1 // pred_fallthru
      _
    // Predicated region
    $region10: #{tpu_custom_call.1} parent=1 // pred_check
      _
    $region11: #{tpu_custom_call.1} parent=1 // pred_check_branch
      %27 = sbr.rel (0) target = $region13
    $region12: #{tpu_custom_call.1} parent=1 // pred_region
      _
    $region13: #{tpu_custom_call.1} parent=1 // pred_fallthru
      _
    // Predicated region
    $region14: #{tpu_custom_call.1} parent=1 // pred_check
      _
    $region15: #{tpu_custom_call.1} parent=1 // pred_check_branch
      %29 = sbr.rel (0) target = $region17
    $region16: #{tpu_custom_call.1} parent=1 // pred_region
      %s31 = ssub.s32 256, 256
      %32 = vsyncadd [#allocation6], %s31
      %s33 = sshll.u32 [#allocation5], 4
      %s34 = int_to_ptr.vmem [resolvable:$true] %s33
      %39 = dma.hbm_to_vmem [thread:$0]  %s3, 256, %s34, [#allocation6], 128, 128, 8
    $region17: #{tpu_custom_call.1} parent=1 // pred_fallthru
      _
    // Predicated region
    $region18: #{tpu_custom_call.1} parent=1 // pred_check
      _
    $region19: #{tpu_custom_call.1} parent=1 // pred_check_branch
      %41 = sbr.rel (0) target = $region21
    $region20: #{tpu_custom_call.1} parent=1 // pred_region
      %42 = dma.done [#allocation3], 4096
    $region21: #{tpu_custom_call.1} parent=1 // pred_fallthru
      _
    // Predicated region
    $region22: #{tpu_custom_call.1} parent=1 // pred_check
      _
    $region23: #{tpu_custom_call.1} parent=1 // pred_check_branch
      %44 = sbr.rel (0) target = $region25
    $region24: #{tpu_custom_call.1} parent=1 // pred_region
      %45 = dma.done [#allocation6], 256
    $region25: #{tpu_custom_call.1} parent=1 // pred_fallthru
      _
    %v46 = vld [vmem:[#allocation2] sm:$0xff]
    %v47 = vld [vmem:[#allocation2 + $0x8] sm:$0xff]
    %v48 = vld [vmem:[#allocation2 + $0x10] sm:$0xff]
    %v49 = vld [vmem:[#allocation2 + $0x18] sm:$0xff]
    %v50 = vld [vmem:[#allocation2 + $0x20] sm:$0xff]
    %v51 = vld [vmem:[#allocation2 + $0x28] sm:$0xff]
    %v52 = vld [vmem:[#allocation2 + $0x30] sm:$0xff]
    %v53 = vld [vmem:[#allocation2 + $0x38] sm:$0xff]
    %v54 = vld [vmem:[#allocation2 + $0x40] sm:$0xff]
    %v55 = vld [vmem:[#allocation2 + $0x48] sm:$0xff]
    %v56 = vld [vmem:[#allocation2 + $0x50] sm:$0xff]
    %v57 = vld [vmem:[#allocation2 + $0x58] sm:$0xff]
    %v58 = vld [vmem:[#allocation2 + $0x60] sm:$0xff]
    %v59 = vld [vmem:[#allocation2 + $0x68] sm:$0xff]
    %v60 = vld [vmem:[#allocation2 + $0x70] sm:$0xff]
    %v61 = vld [vmem:[#allocation2 + $0x78] sm:$0xff]
    %v62 = vld [vmem:[#allocation2 + $0x80] sm:$0xff]
    %v63 = vld [vmem:[#allocation2 + $0x88] sm:$0xff]
    %v64 = vld [vmem:[#allocation2 + $0x90] sm:$0xff]
    %v65 = vld [vmem:[#allocation2 + $0x98] sm:$0xff]
    %v66 = vld [vmem:[#allocation2 + $0xa0] sm:$0xff]
    %v67 = vld [vmem:[#allocation2 + $0xa8] sm:$0xff]
    %v68 = vld [vmem:[#allocation2 + $0xb0] sm:$0xff]
    %v69 = vld [vmem:[#allocation2 + $0xb8] sm:$0xff]
    %v70 = vld [vmem:[#allocation2 + $0xc0] sm:$0xff]
    %v71 = vld [vmem:[#allocation2 + $0xc8] sm:$0xff]
    %v72 = vld [vmem:[#allocation2 + $0xd0] sm:$0xff]
    %v73 = vld [vmem:[#allocation2 + $0xd8] sm:$0xff]
    %v74 = vld [vmem:[#allocation2 + $0xe0] sm:$0xff]
    %v75 = vld [vmem:[#allocation2 + $0xe8] sm:$0xff]
    %v76 = vld [vmem:[#allocation2 + $0xf0] sm:$0xff]
    %v77 = vld [vmem:[#allocation2 + $0xf8] sm:$0xff]
    %vm78 = vcmask 130048
    %v79 = vsel %vm78, %v46, 0.0
    %80 = vadd.xlane.f32.xlu0 %v79
    %v81 = vpop.xlane.xlu0 %80
    %v82 = vsel %vm78, %v47, 0.0
    %83 = vadd.xlane.f32.xlu0 %v82
    %v84 = vpop.xlane.xlu0 %83
    %v85 = vsel %vm78, %v48, 0.0
    %86 = vadd.xlane.f32.xlu0 %v85
    %v87 = vpop.xlane.xlu0 %86
    %v88 = vsel %vm78, %v49, 0.0
    %89 = vadd.xlane.f32.xlu0 %v88
    %v90 = vpop.xlane.xlu0 %89
    %v91 = vsel %vm78, %v50, 0.0
    %92 = vadd.xlane.f32.xlu0 %v91
    %v93 = vpop.xlane.xlu0 %92
    %v94 = vsel %vm78, %v51, 0.0
    %95 = vadd.xlane.f32.xlu0 %v94
    %v96 = vpop.xlane.xlu0 %95
    %v97 = vsel %vm78, %v52, 0.0
    %98 = vadd.xlane.f32.xlu0 %v97
    %v99 = vpop.xlane.xlu0 %98
    %v100 = vsel %vm78, %v53, 0.0
    %101 = vadd.xlane.f32.xlu0 %v100
    %v102 = vpop.xlane.xlu0 %101
    %v103 = vsel %vm78, %v54, 0.0
    %104 = vadd.xlane.f32.xlu0 %v103
    %v105 = vpop.xlane.xlu0 %104
    %v106 = vsel %vm78, %v55, 0.0
    %107 = vadd.xlane.f32.xlu0 %v106
    %v108 = vpop.xlane.xlu0 %107
    %v109 = vsel %vm78, %v56, 0.0
    %110 = vadd.xlane.f32.xlu0 %v109
    %v111 = vpop.xlane.xlu0 %110
    %v112 = vsel %vm78, %v57, 0.0
    %113 = vadd.xlane.f32.xlu0 %v112
    %v114 = vpop.xlane.xlu0 %113
    %v115 = vsel %vm78, %v58, 0.0
    %116 = vadd.xlane.f32.xlu0 %v115
    %v117 = vpop.xlane.xlu0 %116
    %v118 = vsel %vm78, %v59, 0.0
    %119 = vadd.xlane.f32.xlu0 %v118
    %v120 = vpop.xlane.xlu0 %119
    %v121 = vsel %vm78, %v60, 0.0
    %122 = vadd.xlane.f32.xlu0 %v121
    %v123 = vpop.xlane.xlu0 %122
    %v124 = vsel %vm78, %v61, 0.0
    %125 = vadd.xlane.f32.xlu0 %v124
    %v126 = vpop.xlane.xlu0 %125
    %v127 = vsel %vm78, %v62, 0.0
    %128 = vadd.xlane.f32.xlu0 %v127
    %v129 = vpop.xlane.xlu0 %128
    %v130 = vsel %vm78, %v63, 0.0
    %131 = vadd.xlane.f32.xlu0 %v130
    %v132 = vpop.xlane.xlu0 %131
    %v133 = vsel %vm78, %v64, 0.0
    %134 = vadd.xlane.f32.xlu0 %v133
    %v135 = vpop.xlane.xlu0 %134
    %v136 = vsel %vm78, %v65, 0.0
    %137 = vadd.xlane.f32.xlu0 %v136
    %v138 = vpop.xlane.xlu0 %137
    %v139 = vsel %vm78, %v66, 0.0
    %140 = vadd.xlane.f32.xlu0 %v139
    %v141 = vpop.xlane.xlu0 %140
    %v142 = vsel %vm78, %v67, 0.0
    %143 = vadd.xlane.f32.xlu0 %v142
    %v144 = vpop.xlane.xlu0 %143
    %v145 = vsel %vm78, %v68, 0.0
    %146 = vadd.xlane.f32.xlu0 %v145
    %v147 = vpop.xlane.xlu0 %146
    %v148 = vsel %vm78, %v69, 0.0
    %149 = vadd.xlane.f32.xlu0 %v148
    %v150 = vpop.xlane.xlu0 %149
    %v151 = vsel %vm78, %v70, 0.0
    %152 = vadd.xlane.f32.xlu0 %v151
    %v153 = vpop.xlane.xlu0 %152
    %v154 = vsel %vm78, %v71, 0.0
    %155 = vadd.xlane.f32.xlu0 %v154
    %v156 = vpop.xlane.xlu0 %155
    %v157 = vsel %vm78, %v72, 0.0
    %158 = vadd.xlane.f32.xlu0 %v157
    %v159 = vpop.xlane.xlu0 %158
    %v160 = vsel %vm78, %v73, 0.0
    %161 = vadd.xlane.f32.xlu0 %v160
    %v162 = vpop.xlane.xlu0 %161
    %v163 = vsel %vm78, %v74, 0.0
    %164 = vadd.xlane.f32.xlu0 %v163
    %v165 = vpop.xlane.xlu0 %164
    %v166 = vsel %vm78, %v75, 0.0
    %167 = vadd.xlane.f32.xlu0 %v166
    %v168 = vpop.xlane.xlu0 %167
    %v169 = vsel %vm78, %v76, 0.0
    %170 = vadd.xlane.f32.xlu0 %v169
    %v171 = vpop.xlane.xlu0 %170
    %v172 = vsel %vm78, %v77, 0.0
    %173 = vadd.xlane.f32.xlu0 %v172
    %v174 = vpop.xlane.xlu0 %173
    %v175 = vrcp.pop 16.0
    %v176 = vmul.f32 %v81, %v175
    %v177 = vmul.f32 %v84, %v175
    %v178 = vmul.f32 %v87, %v175
    %v179 = vmul.f32 %v90, %v175
    %v180 = vmul.f32 %v93, %v175
    %v181 = vmul.f32 %v96, %v175
    %v182 = vmul.f32 %v99, %v175
    %v183 = vmul.f32 %v102, %v175
    %v184 = vmul.f32 %v105, %v175
    %v185 = vmul.f32 %v108, %v175
    %v186 = vmul.f32 %v111, %v175
    %v187 = vmul.f32 %v114, %v175
    %v188 = vmul.f32 %v117, %v175
    %v189 = vmul.f32 %v120, %v175
    %v190 = vmul.f32 %v123, %v175
    %v191 = vmul.f32 %v126, %v175
    %v192 = vmul.f32 %v129, %v175
    %v193 = vmul.f32 %v132, %v175
    %v194 = vmul.f32 %v135, %v175
    %v195 = vmul.f32 %v138, %v175
    %v196 = vmul.f32 %v141, %v175
    %v197 = vmul.f32 %v144, %v175
    %v198 = vmul.f32 %v147, %v175
    %v199 = vmul.f32 %v150, %v175
    %v200 = vmul.f32 %v153, %v175
    %v201 = vmul.f32 %v156, %v175
    %v202 = vmul.f32 %v159, %v175
    %v203 = vmul.f32 %v162, %v175
    %v204 = vmul.f32 %v165, %v175
    %v205 = vmul.f32 %v168, %v175
    %v206 = vmul.f32 %v171, %v175
    %v207 = vmul.f32 %v174, %v175
    %v208 = vsub.f32 %v46, %v176
    %v209 = vsub.f32 %v47, %v177
    %v210 = vsub.f32 %v48, %v178
    %v211 = vsub.f32 %v49, %v179
    %v212 = vsub.f32 %v50, %v180
    %v213 = vsub.f32 %v51, %v181
    %v214 = vsub.f32 %v52, %v182
    %v215 = vsub.f32 %v53, %v183
    %v216 = vsub.f32 %v54, %v184
    %v217 = vsub.f32 %v55, %v185
    %v218 = vsub.f32 %v56, %v186
    %v219 = vsub.f32 %v57, %v187
    %v220 = vsub.f32 %v58, %v188
    %v221 = vsub.f32 %v59, %v189
    %v222 = vsub.f32 %v60, %v190
    %v223 = vsub.f32 %v61, %v191
    %v224 = vsub.f32 %v62, %v192
    %v225 = vsub.f32 %v63, %v193
    %v226 = vsub.f32 %v64, %v194
    %v227 = vsub.f32 %v65, %v195
    %v228 = vsub.f32 %v66, %v196
    %v229 = vsub.f32 %v67, %v197
    %v230 = vsub.f32 %v68, %v198
    %v231 = vsub.f32 %v69, %v199
    %v232 = vsub.f32 %v70, %v200
    %v233 = vsub.f32 %v71, %v201
    %v234 = vsub.f32 %v72, %v202
    %v235 = vsub.f32 %v73, %v203
    %v236 = vsub.f32 %v74, %v204
    %v237 = vsub.f32 %v75, %v205
    %v238 = vsub.f32 %v76, %v206
    %v239 = vsub.f32 %v77, %v207
    %v240 = vmul.f32 %v208, %v208
    %v241 = vmul.f32 %v209, %v209
    %v242 = vmul.f32 %v210, %v210
    %v243 = vmul.f32 %v211, %v211
    %v244 = vmul.f32 %v212, %v212
    %v245 = vmul.f32 %v213, %v213
    %v246 = vmul.f32 %v214, %v214
    %v247 = vmul.f32 %v215, %v215
    %v248 = vmul.f32 %v216, %v216
    %v249 = vmul.f32 %v217, %v217
    %v250 = vmul.f32 %v218, %v218
    %v251 = vmul.f32 %v219, %v219
    %v252 = vmul.f32 %v220, %v220
    %v253 = vmul.f32 %v221, %v221
    %v254 = vmul.f32 %v222, %v222
    %v255 = vmul.f32 %v223, %v223
    %v256 = vmul.f32 %v224, %v224
    %v257 = vmul.f32 %v225, %v225
    %v258 = vmul.f32 %v226, %v226
    %v259 = vmul.f32 %v227, %v227
    %v260 = vmul.f32 %v228, %v228
    %v261 = vmul.f32 %v229, %v229
    %v262 = vmul.f32 %v230, %v230
    %v263 = vmul.f32 %v231, %v231
    %v264 = vmul.f32 %v232, %v232
    %v265 = vmul.f32 %v233, %v233
    %v266 = vmul.f32 %v234, %v234
    %v267 = vmul.f32 %v235, %v235
    %v268 = vmul.f32 %v236, %v236
    %v269 = vmul.f32 %v237, %v237
    %v270 = vmul.f32 %v238, %v238
    %v271 = vmul.f32 %v239, %v239
    %v272 = vsel %vm78, %v240, 0.0
    %273 = vadd.xlane.f32.xlu0 %v272
    %v274 = vpop.xlane.xlu0 %273
    %v275 = vsel %vm78, %v241, 0.0
    %276 = vadd.xlane.f32.xlu0 %v275
    %v277 = vpop.xlane.xlu0 %276
    %v278 = vsel %vm78, %v242, 0.0
    %279 = vadd.xlane.f32.xlu0 %v278
    %v280 = vpop.xlane.xlu0 %279
    %v281 = vsel %vm78, %v243, 0.0
    %282 = vadd.xlane.f32.xlu0 %v281
    %v283 = vpop.xlane.xlu0 %282
    %v284 = vsel %vm78, %v244, 0.0
    %285 = vadd.xlane.f32.xlu0 %v284
    %v286 = vpop.xlane.xlu0 %285
    %v287 = vsel %vm78, %v245, 0.0
    %288 = vadd.xlane.f32.xlu0 %v287
    %v289 = vpop.xlane.xlu0 %288
    %v290 = vsel %vm78, %v246, 0.0
    %291 = vadd.xlane.f32.xlu0 %v290
    %v292 = vpop.xlane.xlu0 %291
    %v293 = vsel %vm78, %v247, 0.0
    %294 = vadd.xlane.f32.xlu0 %v293
    %v295 = vpop.xlane.xlu0 %294
    %v296 = vsel %vm78, %v248, 0.0
    %297 = vadd.xlane.f32.xlu0 %v296
    %v298 = vpop.xlane.xlu0 %297
    %v299 = vsel %vm78, %v249, 0.0
    %300 = vadd.xlane.f32.xlu0 %v299
    %v301 = vpop.xlane.xlu0 %300
    %v302 = vsel %vm78, %v250, 0.0
    %303 = vadd.xlane.f32.xlu0 %v302
    %v304 = vpop.xlane.xlu0 %303
    %v305 = vsel %vm78, %v251, 0.0
    %306 = vadd.xlane.f32.xlu0 %v305
    %v307 = vpop.xlane.xlu0 %306
    %v308 = vsel %vm78, %v252, 0.0
    %309 = vadd.xlane.f32.xlu0 %v308
    %v310 = vpop.xlane.xlu0 %309
    %v311 = vsel %vm78, %v253, 0.0
    %312 = vadd.xlane.f32.xlu0 %v311
    %v313 = vpop.xlane.xlu0 %312
    %v314 = vsel %vm78, %v254, 0.0
    %315 = vadd.xlane.f32.xlu0 %v314
    %v316 = vpop.xlane.xlu0 %315
    %v317 = vsel %vm78, %v255, 0.0
    %318 = vadd.xlane.f32.xlu0 %v317
    %v319 = vpop.xlane.xlu0 %318
    %v320 = vsel %vm78, %v256, 0.0
    %321 = vadd.xlane.f32.xlu0 %v320
    %v322 = vpop.xlane.xlu0 %321
    %v323 = vsel %vm78, %v257, 0.0
    %324 = vadd.xlane.f32.xlu0 %v323
    %v325 = vpop.xlane.xlu0 %324
    %v326 = vsel %vm78, %v258, 0.0
    %327 = vadd.xlane.f32.xlu0 %v326
    %v328 = vpop.xlane.xlu0 %327
    %v329 = vsel %vm78, %v259, 0.0
    %330 = vadd.xlane.f32.xlu0 %v329
    %v331 = vpop.xlane.xlu0 %330
    %v332 = vsel %vm78, %v260, 0.0
    %333 = vadd.xlane.f32.xlu0 %v332
    %v334 = vpop.xlane.xlu0 %333
    %v335 = vsel %vm78, %v261, 0.0
    %336 = vadd.xlane.f32.xlu0 %v335
    %v337 = vpop.xlane.xlu0 %336
    %v338 = vsel %vm78, %v262, 0.0
    %339 = vadd.xlane.f32.xlu0 %v338
    %v340 = vpop.xlane.xlu0 %339
    %v341 = vsel %vm78, %v263, 0.0
    %342 = vadd.xlane.f32.xlu0 %v341
    %v343 = vpop.xlane.xlu0 %342
    %v344 = vsel %vm78, %v264, 0.0
    %345 = vadd.xlane.f32.xlu0 %v344
    %v346 = vpop.xlane.xlu0 %345
    %v347 = vsel %vm78, %v265, 0.0
    %348 = vadd.xlane.f32.xlu0 %v347
    %v349 = vpop.xlane.xlu0 %348
    %v350 = vsel %vm78, %v266, 0.0
    %351 = vadd.xlane.f32.xlu0 %v350
    %v352 = vpop.xlane.xlu0 %351
    %v353 = vsel %vm78, %v267, 0.0
    %354 = vadd.xlane.f32.xlu0 %v353
    %v355 = vpop.xlane.xlu0 %354
    %v356 = vsel %vm78, %v268, 0.0
    %357 = vadd.xlane.f32.xlu0 %v356
    %v358 = vpop.xlane.xlu0 %357
    %v359 = vsel %vm78, %v269, 0.0
    %360 = vadd.xlane.f32.xlu0 %v359
    %v361 = vpop.xlane.xlu0 %360
    %v362 = vsel %vm78, %v270, 0.0
    %363 = vadd.xlane.f32.xlu0 %v362
    %v364 = vpop.xlane.xlu0 %363
    %v365 = vsel %vm78, %v271, 0.0
    %366 = vadd.xlane.f32.xlu0 %v365
    %v367 = vpop.xlane.xlu0 %366
    %v368 = vmul.f32 %v274, %v175
    %v369 = vmul.f32 %v277, %v175
    %v370 = vmul.f32 %v280, %v175
    %v371 = vmul.f32 %v283, %v175
    %v372 = vmul.f32 %v286, %v175
    %v373 = vmul.f32 %v289, %v175
    %v374 = vmul.f32 %v292, %v175
    %v375 = vmul.f32 %v295, %v175
    %v376 = vmul.f32 %v298, %v175
    %v377 = vmul.f32 %v301, %v175
    %v378 = vmul.f32 %v304, %v175
    %v379 = vmul.f32 %v307, %v175
    %v380 = vmul.f32 %v310, %v175
    %v381 = vmul.f32 %v313, %v175
    %v382 = vmul.f32 %v316, %v175
    %v383 = vmul.f32 %v319, %v175
    %v384 = vmul.f32 %v322, %v175
    %v385 = vmul.f32 %v325, %v175
    %v386 = vmul.f32 %v328, %v175
    %v387 = vmul.f32 %v331, %v175
    %v388 = vmul.f32 %v334, %v175
    %v389 = vmul.f32 %v337, %v175
    %v390 = vmul.f32 %v340, %v175
    %v391 = vmul.f32 %v343, %v175
    %v392 = vmul.f32 %v346, %v175
    %v393 = vmul.f32 %v349, %v175
    %v394 = vmul.f32 %v352, %v175
    %v395 = vmul.f32 %v355, %v175
    %v396 = vmul.f32 %v358, %v175
    %v397 = vmul.f32 %v361, %v175
    %v398 = vmul.f32 %v364, %v175
    %v399 = vmul.f32 %v367, %v175
    %v400 = vadd.f32 %v368, 1e-05
    %v401 = vadd.f32 %v369, 1e-05
    %v402 = vadd.f32 %v370, 1e-05
    %v403 = vadd.f32 %v371, 1e-05
    %v404 = vadd.f32 %v372, 1e-05
    %v405 = vadd.f32 %v373, 1e-05
    %v406 = vadd.f32 %v374, 1e-05
    %v407 = vadd.f32 %v375, 1e-05
    %v408 = vadd.f32 %v376, 1e-05
    %v409 = vadd.f32 %v377, 1e-05
    %v410 = vadd.f32 %v378, 1e-05
    %v411 = vadd.f32 %v379, 1e-05
    %v412 = vadd.f32 %v380, 1e-05
    %v413 = vadd.f32 %v381, 1e-05
    %v414 = vadd.f32 %v382, 1e-05
    %v415 = vadd.f32 %v383, 1e-05
    %v416 = vadd.f32 %v384, 1e-05
    %v417 = vadd.f32 %v385, 1e-05
    %v418 = vadd.f32 %v386, 1e-05
    %v419 = vadd.f32 %v387, 1e-05
    %v420 = vadd.f32 %v388, 1e-05
    %v421 = vadd.f32 %v389, 1e-05
    %v422 = vadd.f32 %v390, 1e-05
    %v423 = vadd.f32 %v391, 1e-05
    %v424 = vadd.f32 %v392, 1e-05
    %v425 = vadd.f32 %v393, 1e-05
    %v426 = vadd.f32 %v394, 1e-05
    %v427 = vadd.f32 %v395, 1e-05
    %v428 = vadd.f32 %v396, 1e-05
    %v429 = vadd.f32 %v397, 1e-05
    %v430 = vadd.f32 %v398, 1e-05
    %v431 = vadd.f32 %v399, 1e-05
    %v432 = vrsqrt.pop %v400
    %v433 = vrsqrt.pop %v401
    %v434 = vrsqrt.pop %v402
    %v435 = vrsqrt.pop %v403
    %v436 = vrsqrt.pop %v404
    %v437 = vrsqrt.pop %v405
    %v438 = vrsqrt.pop %v406
    %v439 = vrsqrt.pop %v407
    %v440 = vrsqrt.pop %v408
    %v441 = vrsqrt.pop %v409
    %v442 = vrsqrt.pop %v410
    %v443 = vrsqrt.pop %v411
    %v444 = vrsqrt.pop %v412
    %v445 = vrsqrt.pop %v413
    %v446 = vrsqrt.pop %v414
    %v447 = vrsqrt.pop %v415
    %v448 = vrsqrt.pop %v416
    %v449 = vrsqrt.pop %v417
    %v450 = vrsqrt.pop %v418
    %v451 = vrsqrt.pop %v419
    %v452 = vrsqrt.pop %v420
    %v453 = vrsqrt.pop %v421
    %v454 = vrsqrt.pop %v422
    %v455 = vrsqrt.pop %v423
    %v456 = vrsqrt.pop %v424
    %v457 = vrsqrt.pop %v425
    %v458 = vrsqrt.pop %v426
    %v459 = vrsqrt.pop %v427
    %v460 = vrsqrt.pop %v428
    %v461 = vrsqrt.pop %v429
    %v462 = vrsqrt.pop %v430
    %v463 = vrsqrt.pop %v431
    %v464 = vmul.f32 %v208, %v432
    %v465 = vmul.f32 %v209, %v433
    %v466 = vmul.f32 %v210, %v434
    %v467 = vmul.f32 %v211, %v435
    %v468 = vmul.f32 %v212, %v436
    %v469 = vmul.f32 %v213, %v437
    %v470 = vmul.f32 %v214, %v438
    %v471 = vmul.f32 %v215, %v439
    %v472 = vmul.f32 %v216, %v440
    %v473 = vmul.f32 %v217, %v441
    %v474 = vmul.f32 %v218, %v442
    %v475 = vmul.f32 %v219, %v443
    %v476 = vmul.f32 %v220, %v444
    %v477 = vmul.f32 %v221, %v445
    %v478 = vmul.f32 %v222, %v446
    %v479 = vmul.f32 %v223, %v447
    %v480 = vmul.f32 %v224, %v448
    %v481 = vmul.f32 %v225, %v449
    %v482 = vmul.f32 %v226, %v450
    %v483 = vmul.f32 %v227, %v451
    %v484 = vmul.f32 %v228, %v452
    %v485 = vmul.f32 %v229, %v453
    %v486 = vmul.f32 %v230, %v454
    %v487 = vmul.f32 %v231, %v455
    %v488 = vmul.f32 %v232, %v456
    %v489 = vmul.f32 %v233, %v457
    %v490 = vmul.f32 %v234, %v458
    %v491 = vmul.f32 %v235, %v459
    %v492 = vmul.f32 %v236, %v460
    %v493 = vmul.f32 %v237, %v461
    %v494 = vmul.f32 %v238, %v462
    %v495 = vmul.f32 %v239, %v463
    %v496 = vld [vmem:[%s1] sm:$0x1]
    %v498 = vlaneseq
    %v499 = vshrl.u32 %v498, 7
    %v500 = vsub.s32 0, %v499
    %v501 = vrot.slane %v496, %v500
    %v503 = vmul.f32 %v464, %v501
    %v504 = vmul.f32 %v465, %v501
    %v505 = vmul.f32 %v466, %v501
    %v506 = vmul.f32 %v467, %v501
    %v507 = vmul.f32 %v468, %v501
    %v508 = vmul.f32 %v469, %v501
    %v509 = vmul.f32 %v470, %v501
    %v510 = vmul.f32 %v471, %v501
    %v511 = vmul.f32 %v472, %v501
    %v512 = vmul.f32 %v473, %v501
    %v513 = vmul.f32 %v474, %v501
    %v514 = vmul.f32 %v475, %v501
    %v515 = vmul.f32 %v476, %v501
    %v516 = vmul.f32 %v477, %v501
    %v517 = vmul.f32 %v478, %v501
    %v518 = vmul.f32 %v479, %v501
    %v519 = vmul.f32 %v480, %v501
    %v520 = vmul.f32 %v481, %v501
    %v521 = vmul.f32 %v482, %v501
    %v522 = vmul.f32 %v483, %v501
    %v523 = vmul.f32 %v484, %v501
    %v524 = vmul.f32 %v485, %v501
    %v525 = vmul.f32 %v486, %v501
    %v526 = vmul.f32 %v487, %v501
    %v527 = vmul.f32 %v488, %v501
    %v528 = vmul.f32 %v489, %v501
    %v529 = vmul.f32 %v490, %v501
    %v530 = vmul.f32 %v491, %v501
    %v531 = vmul.f32 %v492, %v501
    %v532 = vmul.f32 %v493, %v501
    %v533 = vmul.f32 %v494, %v501
    %v534 = vmul.f32 %v495, %v501
    %v535 = vld [vmem:[%s2] sm:$0x1]
    %v537 = vlaneseq
    %v538 = vshrl.u32 %v537, 7
    %v539 = vsub.s32 0, %v538
    %v540 = vrot.slane %v535, %v539
    %v542 = vadd.f32 %v503, %v540
    %v543 = vadd.f32 %v504, %v540
    %v544 = vadd.f32 %v505, %v540
    %v545 = vadd.f32 %v506, %v540
    %v546 = vadd.f32 %v507, %v540
    %v547 = vadd.f32 %v508, %v540
    %v548 = vadd.f32 %v509, %v540
    %v549 = vadd.f32 %v510, %v540
    %v550 = vadd.f32 %v511, %v540
    %v551 = vadd.f32 %v512, %v540
    %v552 = vadd.f32 %v513, %v540
    %v553 = vadd.f32 %v514, %v540
    %v554 = vadd.f32 %v515, %v540
    %v555 = vadd.f32 %v516, %v540
    %v556 = vadd.f32 %v517, %v540
    %v557 = vadd.f32 %v518, %v540
    %v558 = vadd.f32 %v519, %v540
    %v559 = vadd.f32 %v520, %v540
    %v560 = vadd.f32 %v521, %v540
    %v561 = vadd.f32 %v522, %v540
    %v562 = vadd.f32 %v523, %v540
    %v563 = vadd.f32 %v524, %v540
    %v564 = vadd.f32 %v525, %v540
    %v565 = vadd.f32 %v526, %v540
    %v566 = vadd.f32 %v527, %v540
    %v567 = vadd.f32 %v528, %v540
    %v568 = vadd.f32 %v529, %v540
    %v569 = vadd.f32 %v530, %v540
    %v570 = vadd.f32 %v531, %v540
    %v571 = vadd.f32 %v532, %v540
    %v572 = vadd.f32 %v533, %v540
    %v573 = vadd.f32 %v534, %v540
    %v574 = vld [vmem:[#allocation5] sm:$0xff]
    %v575 = vld [vmem:[#allocation5 + $0x8] sm:$0xff]
    %v577 = vsel %vm78, %v574, 0
    %v580 = vsel %vm78, %v575, 0
    %v583 = vsel %vm78, %v542, 0
    %v586 = vsel %vm78, %v543, 0
    %v589 = vsel %vm78, %v544, 0
    %v592 = vsel %vm78, %v545, 0
    %v595 = vsel %vm78, %v546, 0
    %v598 = vsel %vm78, %v547, 0
    %v601 = vsel %vm78, %v548, 0
    %v604 = vsel %vm78, %v549, 0
    %v607 = vsel %vm78, %v550, 0
    %v610 = vsel %vm78, %v551, 0
    %v613 = vsel %vm78, %v552, 0
    %v616 = vsel %vm78, %v553, 0
    %v619 = vsel %vm78, %v554, 0
    %v622 = vsel %vm78, %v555, 0
    %v625 = vsel %vm78, %v556, 0
    %v628 = vsel %vm78, %v557, 0
    %v631 = vsel %vm78, %v558, 0
    %v634 = vsel %vm78, %v559, 0
    %v637 = vsel %vm78, %v560, 0
    %v640 = vsel %vm78, %v561, 0
    %v643 = vsel %vm78, %v562, 0
    %v646 = vsel %vm78, %v563, 0
    %v649 = vsel %vm78, %v564, 0
    %v652 = vsel %vm78, %v565, 0
    %v655 = vsel %vm78, %v566, 0
    %v658 = vsel %vm78, %v567, 0
    %v661 = vsel %vm78, %v568, 0
    %v664 = vsel %vm78, %v569, 0
    %v667 = vsel %vm78, %v570, 0
    %v670 = vsel %vm78, %v571, 0
    %v673 = vsel %vm78, %v572, 0
    %v676 = vsel %vm78, %v573, 0
    %678 = vmatprep.subr.mxu0 0.0
    %v679 = vand.u32 %v583, 4294901760
    %680 = vmatpush1.xpose.msra.mxu0 %v679
    %681 = vmatprep.subr.mxu0 0.0
    %v682 = vand.u32 %v586, 4294901760
    %683 = vmatpush1.xpose.msra.mxu0 %v682
    %684 = vmatprep.subr.mxu0 0.0
    %v685 = vand.u32 %v589, 4294901760
    %686 = vmatpush1.xpose.msra.mxu0 %v685
    %687 = vmatprep.subr.mxu0 0.0
    %v688 = vand.u32 %v592, 4294901760
    %689 = vmatpush1.xpose.msra.mxu0 %v688
    %690 = vmatprep.subr.mxu0 0.0
    %v691 = vand.u32 %v595, 4294901760
    %692 = vmatpush1.xpose.msra.mxu0 %v691
    %693 = vmatprep.subr.mxu0 0.0
    %v694 = vand.u32 %v598, 4294901760
    %695 = vmatpush1.xpose.msra.mxu0 %v694
    %696 = vmatprep.subr.mxu0 0.0
    %v697 = vand.u32 %v601, 4294901760
    %698 = vmatpush1.xpose.msra.mxu0 %v697
    %699 = vmatprep.subr.mxu0 0.0
    %v700 = vand.u32 %v604, 4294901760
    %701 = vmatpush1.xpose.msra.mxu0 %v700
    %702 = vmatprep.subr.mxu0 0.0
    %v703 = vand.u32 %v607, 4294901760
    %704 = vmatpush1.xpose.msra.mxu0 %v703
    %705 = vmatprep.subr.mxu0 0.0
    %v706 = vand.u32 %v610, 4294901760
    %707 = vmatpush1.xpose.msra.mxu0 %v706
    %708 = vmatprep.subr.mxu0 0.0
    %v709 = vand.u32 %v613, 4294901760
    %710 = vmatpush1.xpose.msra.mxu0 %v709
    %711 = vmatprep.subr.mxu0 0.0
    %v712 = vand.u32 %v616, 4294901760
    %713 = vmatpush1.xpose.msra.mxu0 %v712
    %714 = vmatprep.subr.mxu0 0.0
    %v715 = vand.u32 %v619, 4294901760
    %716 = vmatpush1.xpose.msra.mxu0 %v715
    %717 = vmatprep.subr.mxu0 0.0
    %v718 = vand.u32 %v622, 4294901760
    %719 = vmatpush1.xpose.msra.mxu0 %v718
    %720 = vmatprep.subr.mxu0 0.0
    %v721 = vand.u32 %v625, 4294901760
    %722 = vmatpush1.xpose.msra.mxu0 %v721
    %723 = vmatprep.subr.mxu0 0.0
    %v724 = vand.u32 %v628, 4294901760
    %725 = vmatpush1.xpose.msra.mxu0 %v724
    %726 = vmatprep.subr.mxu0 0.0
    %v727 = vand.u32 %v631, 4294901760
    %728 = vmatpush1.xpose.msra.mxu0 %v727
    %729 = vmatprep.subr.mxu0 0.0
    %v730 = vand.u32 %v634, 4294901760
    %731 = vmatpush1.xpose.msra.mxu0 %v730
    %732 = vmatprep.subr.mxu0 0.0
    %v733 = vand.u32 %v637, 4294901760
    %734 = vmatpush1.xpose.msra.mxu0 %v733
    %735 = vmatprep.subr.mxu0 0.0
    %v736 = vand.u32 %v640, 4294901760
    %737 = vmatpush1.xpose.msra.mxu0 %v736
    %738 = vmatprep.subr.mxu0 0.0
    %v739 = vand.u32 %v643, 4294901760
    %740 = vmatpush1.xpose.msra.mxu0 %v739
    %741 = vmatprep.subr.mxu0 0.0
    %v742 = vand.u32 %v646, 4294901760
    %743 = vmatpush1.xpose.msra.mxu0 %v742
    %744 = vmatprep.subr.mxu0 0.0
    %v745 = vand.u32 %v649, 4294901760
    %746 = vmatpush1.xpose.msra.mxu0 %v745
    %747 = vmatprep.subr.mxu0 0.0
    %v748 = vand.u32 %v652, 4294901760
    %749 = vmatpush1.xpose.msra.mxu0 %v748
    %750 = vmatprep.subr.mxu0 0.0
    %v751 = vand.u32 %v655, 4294901760
    %752 = vmatpush1.xpose.msra.mxu0 %v751
    %753 = vmatprep.subr.mxu0 0.0
    %v754 = vand.u32 %v658, 4294901760
    %755 = vmatpush1.xpose.msra.mxu0 %v754
    %756 = vmatprep.subr.mxu0 0.0
    %v757 = vand.u32 %v661, 4294901760
    %758 = vmatpush1.xpose.msra.mxu0 %v757
    %759 = vmatprep.subr.mxu0 0.0
    %v760 = vand.u32 %v664, 4294901760
    %761 = vmatpush1.xpose.msra.mxu0 %v760
    %762 = vmatprep.subr.mxu0 0.0
    %v763 = vand.u32 %v667, 4294901760
    %764 = vmatpush1.xpose.msra.mxu0 %v763
    %765 = vmatprep.subr.mxu0 0.0
    %v766 = vand.u32 %v670, 4294901760
    %767 = vmatpush1.xpose.msra.mxu0 %v766
    %768 = vmatprep.subr.mxu0 0.0
    %v769 = vand.u32 %v673, 4294901760
    %770 = vmatpush1.xpose.msra.mxu0 %v769
    %771 = vmatprep.subr.mxu0 0.0
    %v772 = vand.u32 %v676, 4294901760
    %773 = vmatpush1.xpose.msra.mxu0 %v772
    %774 = vmatprep.mubr.f32.mxu0 0.0
    %v775 = vand.u32 %v577, 4294901760
    %v776 = vsub.f32 %v577, %v775
    %v777 = vand.u32 %v776, 4294901760
    %v778 = vsub.f32 %v776, %v777
    %v779 = vand.u32 %v778, 4294901760
    %780 = vmatmul.mubr.f32.gmra.mrb[0].mxu0 %v779
    %v781 = vpop.f32.mrb[0].mxu0
    %v782 = vadd.f32 0.0, %v781
    %v783 = vpop.f32.mrb[0].mxu0
    %v784 = vadd.f32 0.0, %v783
    %785 = vmatprep.mubr.f32.mxu0 0.0
    %v786 = vand.u32 %v580, 4294901760
    %v787 = vsub.f32 %v580, %v786
    %v788 = vand.u32 %v787, 4294901760
    %v789 = vsub.f32 %v787, %v788
    %v790 = vand.u32 %v789, 4294901760
    %791 = vmatmul.mubr.f32.gmra.mrb[0].mxu0 %v790
    %v792 = vpop.f32.mrb[0].mxu0
    %v793 = vadd.f32 0.0, %v792
    %v794 = vpop.f32.mrb[0].mxu0
    %v795 = vadd.f32 0.0, %v794
    %796 = vdwg.mxu0
    %797 = vmatprep.subr.mxu0 0.0
    %v798 = vand.u32 %v583, 4294901760
    %v799 = vsub.f32 %v583, %v798
    %v800 = vand.u32 %v799, 4294901760
    %v801 = vsub.f32 %v799, %v800
    %v802 = vand.u32 %v801, 4294901760
    %803 = vmatpush1.xpose.msra.mxu0 %v802
    %804 = vmatprep.subr.mxu0 0.0
    %v805 = vand.u32 %v586, 4294901760
    %v806 = vsub.f32 %v586, %v805
    %v807 = vand.u32 %v806, 4294901760
    %v808 = vsub.f32 %v806, %v807
    %v809 = vand.u32 %v808, 4294901760
    %810 = vmatpush1.xpose.msra.mxu0 %v809
    %811 = vmatprep.subr.mxu0 0.0
    %v812 = vand.u32 %v589, 4294901760
    %v813 = vsub.f32 %v589, %v812
    %v814 = vand.u32 %v813, 4294901760
    %v815 = vsub.f32 %v813, %v814
    %v816 = vand.u32 %v815, 4294901760
    %817 = vmatpush1.xpose.msra.mxu0 %v816
    %818 = vmatprep.subr.mxu0 0.0
    %v819 = vand.u32 %v592, 4294901760
    %v820 = vsub.f32 %v592, %v819
    %v821 = vand.u32 %v820, 4294901760
    %v822 = vsub.f32 %v820, %v821
    %v823 = vand.u32 %v822, 4294901760
    %824 = vmatpush1.xpose.msra.mxu0 %v823
    %825 = vmatprep.subr.mxu0 0.0
    %v826 = vand.u32 %v595, 4294901760
    %v827 = vsub.f32 %v595, %v826
    %v828 = vand.u32 %v827, 4294901760
    %v829 = vsub.f32 %v827, %v828
    %v830 = vand.u32 %v829, 4294901760
    %831 = vmatpush1.xpose.msra.mxu0 %v830
    %832 = vmatprep.subr.mxu0 0.0
    %v833 = vand.u32 %v598, 4294901760
    %v834 = vsub.f32 %v598, %v833
    %v835 = vand.u32 %v834, 4294901760
    %v836 = vsub.f32 %v834, %v835
    %v837 = vand.u32 %v836, 4294901760
    %838 = vmatpush1.xpose.msra.mxu0 %v837
    %839 = vmatprep.subr.mxu0 0.0
    %v840 = vand.u32 %v601, 4294901760
    %v841 = vsub.f32 %v601, %v840
    %v842 = vand.u32 %v841, 4294901760
    %v843 = vsub.f32 %v841, %v842
    %v844 = vand.u32 %v843, 4294901760
    %845 = vmatpush1.xpose.msra.mxu0 %v844
    %846 = vmatprep.subr.mxu0 0.0
    %v847 = vand.u32 %v604, 4294901760
    %v848 = vsub.f32 %v604, %v847
    %v849 = vand.u32 %v848, 4294901760
    %v850 = vsub.f32 %v848, %v849
    %v851 = vand.u32 %v850, 4294901760
    %852 = vmatpush1.xpose.msra.mxu0 %v851
    %853 = vmatprep.subr.mxu0 0.0
    %v854 = vand.u32 %v607, 4294901760
    %v855 = vsub.f32 %v607, %v854
    %v856 = vand.u32 %v855, 4294901760
    %v857 = vsub.f32 %v855, %v856
    %v858 = vand.u32 %v857, 4294901760
    %859 = vmatpush1.xpose.msra.mxu0 %v858
    %860 = vmatprep.subr.mxu0 0.0
    %v861 = vand.u32 %v610, 4294901760
    %v862 = vsub.f32 %v610, %v861
    %v863 = vand.u32 %v862, 4294901760
    %v864 = vsub.f32 %v862, %v863
    %v865 = vand.u32 %v864, 4294901760
    %866 = vmatpush1.xpose.msra.mxu0 %v865
    %867 = vmatprep.subr.mxu0 0.0
    %v868 = vand.u32 %v613, 4294901760
    %v869 = vsub.f32 %v613, %v868
    %v870 = vand.u32 %v869, 4294901760
    %v871 = vsub.f32 %v869, %v870
    %v872 = vand.u32 %v871, 4294901760
    %873 = vmatpush1.xpose.msra.mxu0 %v872
    %874 = vmatprep.subr.mxu0 0.0
    %v875 = vand.u32 %v616, 4294901760
    %v876 = vsub.f32 %v616, %v875
    %v877 = vand.u32 %v876, 4294901760
    %v878 = vsub.f32 %v876, %v877
    %v879 = vand.u32 %v878, 4294901760
    %880 = vmatpush1.xpose.msra.mxu0 %v879
    %881 = vmatprep.subr.mxu0 0.0
    %v882 = vand.u32 %v619, 4294901760
    %v883 = vsub.f32 %v619, %v882
    %v884 = vand.u32 %v883, 4294901760
    %v885 = vsub.f32 %v883, %v884
    %v886 = vand.u32 %v885, 4294901760
    %887 = vmatpush1.xpose.msra.mxu0 %v886
    %888 = vmatprep.subr.mxu0 0.0
    %v889 = vand.u32 %v622, 4294901760
    %v890 = vsub.f32 %v622, %v889
    %v891 = vand.u32 %v890, 4294901760
    %v892 = vsub.f32 %v890, %v891
    %v893 = vand.u32 %v892, 4294901760
    %894 = vmatpush1.xpose.msra.mxu0 %v893
    %895 = vmatprep.subr.mxu0 0.0
    %v896 = vand.u32 %v625, 4294901760
    %v897 = vsub.f32 %v625, %v896
    %v898 = vand.u32 %v897, 4294901760
    %v899 = vsub.f32 %v897, %v898
    %v900 = vand.u32 %v899, 4294901760
    %901 = vmatpush1.xpose.msra.mxu0 %v900
    %902 = vmatprep.subr.mxu0 0.0
    %v903 = vand.u32 %v628, 4294901760
    %v904 = vsub.f32 %v628, %v903
    %v905 = vand.u32 %v904, 4294901760
    %v906 = vsub.f32 %v904, %v905
    %v907 = vand.u32 %v906, 4294901760
    %908 = vmatpush1.xpose.msra.mxu0 %v907
    %909 = vmatprep.subr.mxu0 0.0
    %v910 = vand.u32 %v631, 4294901760
    %v911 = vsub.f32 %v631, %v910
    %v912 = vand.u32 %v911, 4294901760
    %v913 = vsub.f32 %v911, %v912
    %v914 = vand.u32 %v913, 4294901760
    %915 = vmatpush1.xpose.msra.mxu0 %v914
    %916 = vmatprep.subr.mxu0 0.0
    %v917 = vand.u32 %v634, 4294901760
    %v918 = vsub.f32 %v634, %v917
    %v919 = vand.u32 %v918, 4294901760
    %v920 = vsub.f32 %v918, %v919
    %v921 = vand.u32 %v920, 4294901760
    %922 = vmatpush1.xpose.msra.mxu0 %v921
    %923 = vmatprep.subr.mxu0 0.0
    %v924 = vand.u32 %v637, 4294901760
    %v925 = vsub.f32 %v637, %v924
    %v926 = vand.u32 %v925, 4294901760
    %v927 = vsub.f32 %v925, %v926
    %v928 = vand.u32 %v927, 4294901760
    %929 = vmatpush1.xpose.msra.mxu0 %v928
    %930 = vmatprep.subr.mxu0 0.0
    %v931 = vand.u32 %v640, 4294901760
    %v932 = vsub.f32 %v640, %v931
    %v933 = vand.u32 %v932, 4294901760
    %v934 = vsub.f32 %v932, %v933
    %v935 = vand.u32 %v934, 4294901760
    %936 = vmatpush1.xpose.msra.mxu0 %v935
    %937 = vmatprep.subr.mxu0 0.0
    %v938 = vand.u32 %v643, 4294901760
    %v939 = vsub.f32 %v643, %v938
    %v940 = vand.u32 %v939, 4294901760
    %v941 = vsub.f32 %v939, %v940
    %v942 = vand.u32 %v941, 4294901760
    %943 = vmatpush1.xpose.msra.mxu0 %v942
    %944 = vmatprep.subr.mxu0 0.0
    %v945 = vand.u32 %v646, 4294901760
    %v946 = vsub.f32 %v646, %v945
    %v947 = vand.u32 %v946, 4294901760
    %v948 = vsub.f32 %v946, %v947
    %v949 = vand.u32 %v948, 4294901760
    %950 = vmatpush1.xpose.msra.mxu0 %v949
    %951 = vmatprep.subr.mxu0 0.0
    %v952 = vand.u32 %v649, 4294901760
    %v953 = vsub.f32 %v649, %v952
    %v954 = vand.u32 %v953, 4294901760
    %v955 = vsub.f32 %v953, %v954
    %v956 = vand.u32 %v955, 4294901760
    %957 = vmatpush1.xpose.msra.mxu0 %v956
    %958 = vmatprep.subr.mxu0 0.0
    %v959 = vand.u32 %v652, 4294901760
    %v960 = vsub.f32 %v652, %v959
    %v961 = vand.u32 %v960, 4294901760
    %v962 = vsub.f32 %v960, %v961
    %v963 = vand.u32 %v962, 4294901760
    %964 = vmatpush1.xpose.msra.mxu0 %v963
    %965 = vmatprep.subr.mxu0 0.0
    %v966 = vand.u32 %v655, 4294901760
    %v967 = vsub.f32 %v655, %v966
    %v968 = vand.u32 %v967, 4294901760
    %v969 = vsub.f32 %v967, %v968
    %v970 = vand.u32 %v969, 4294901760
    %971 = vmatpush1.xpose.msra.mxu0 %v970
    %972 = vmatprep.subr.mxu0 0.0
    %v973 = vand.u32 %v658, 4294901760
    %v974 = vsub.f32 %v658, %v973
    %v975 = vand.u32 %v974, 4294901760
    %v976 = vsub.f32 %v974, %v975
    %v977 = vand.u32 %v976, 4294901760
    %978 = vmatpush1.xpose.msra.mxu0 %v977
    %979 = vmatprep.subr.mxu0 0.0
    %v980 = vand.u32 %v661, 4294901760
    %v981 = vsub.f32 %v661, %v980
    %v982 = vand.u32 %v981, 4294901760
    %v983 = vsub.f32 %v981, %v982
    %v984 = vand.u32 %v983, 4294901760
    %985 = vmatpush1.xpose.msra.mxu0 %v984
    %986 = vmatprep.subr.mxu0 0.0
    %v987 = vand.u32 %v664, 4294901760
    %v988 = vsub.f32 %v664, %v987
    %v989 = vand.u32 %v988, 4294901760
    %v990 = vsub.f32 %v988, %v989
    %v991 = vand.u32 %v990, 4294901760
    %992 = vmatpush1.xpose.msra.mxu0 %v991
    %993 = vmatprep.subr.mxu0 0.0
    %v994 = vand.u32 %v667, 4294901760
    %v995 = vsub.f32 %v667, %v994
    %v996 = vand.u32 %v995, 4294901760
    %v997 = vsub.f32 %v995, %v996
    %v998 = vand.u32 %v997, 4294901760
    %999 = vmatpush1.xpose.msra.mxu0 %v998
    %1000 = vmatprep.subr.mxu0 0.0
    %v1001 = vand.u32 %v670, 4294901760
    %v1002 = vsub.f32 %v670, %v1001
    %v1003 = vand.u32 %v1002, 4294901760
    %v1004 = vsub.f32 %v1002, %v1003
    %v1005 = vand.u32 %v1004, 4294901760
    %1006 = vmatpush1.xpose.msra.mxu0 %v1005
    %1007 = vmatprep.subr.mxu0 0.0
    %v1008 = vand.u32 %v673, 4294901760
    %v1009 = vsub.f32 %v673, %v1008
    %v1010 = vand.u32 %v1009, 4294901760
    %v1011 = vsub.f32 %v1009, %v1010
    %v1012 = vand.u32 %v1011, 4294901760
    %1013 = vmatpush1.xpose.msra.mxu0 %v1012
    %1014 = vmatprep.subr.mxu0 0.0
    %v1015 = vand.u32 %v676, 4294901760
    %v1016 = vsub.f32 %v676, %v1015
    %v1017 = vand.u32 %v1016, 4294901760
    %v1018 = vsub.f32 %v1016, %v1017
    %v1019 = vand.u32 %v1018, 4294901760
    %1020 = vmatpush1.xpose.msra.mxu0 %v1019
    %1021 = vmatprep.mubr.f32.mxu0 0.0
    %v1022 = vand.u32 %v577, 4294901760
    %1023 = vmatmul.mubr.f32.gmra.mrb[0].mxu0 %v1022
    %v1024 = vpop.f32.mrb[0].mxu0
    %v1025 = vadd.f32 %v782, %v1024
    %v1026 = vpop.f32.mrb[0].mxu0
    %v1027 = vadd.f32 %v784, %v1026
    %1028 = vmatprep.mubr.f32.mxu0 0.0
    %v1029 = vand.u32 %v580, 4294901760
    %1030 = vmatmul.mubr.f32.gmra.mrb[0].mxu0 %v1029
    %v1031 = vpop.f32.mrb[0].mxu0
    %v1032 = vadd.f32 %v793, %v1031
    %v1033 = vpop.f32.mrb[0].mxu0
    %v1034 = vadd.f32 %v795, %v1033
    %1035 = vdwg.mxu0
    %1036 = vmatprep.subr.mxu0 0.0
    %v1037 = vand.u32 %v583, 4294901760
    %v1038 = vsub.f32 %v583, %v1037
    %1039 = vmatpush1.xpose.msra.mxu0 %v1038
    %1040 = vmatprep.subr.mxu0 0.0
    %v1041 = vand.u32 %v586, 4294901760
    %v1042 = vsub.f32 %v586, %v1041
    %1043 = vmatpush1.xpose.msra.mxu0 %v1042
    %1044 = vmatprep.subr.mxu0 0.0
    %v1045 = vand.u32 %v589, 4294901760
    %v1046 = vsub.f32 %v589, %v1045
    %1047 = vmatpush1.xpose.msra.mxu0 %v1046
    %1048 = vmatprep.subr.mxu0 0.0
    %v1049 = vand.u32 %v592, 4294901760
    %v1050 = vsub.f32 %v592, %v1049
    %1051 = vmatpush1.xpose.msra.mxu0 %v1050
    %1052 = vmatprep.subr.mxu0 0.0
    %v1053 = vand.u32 %v595, 4294901760
    %v1054 = vsub.f32 %v595, %v1053
    %1055 = vmatpush1.xpose.msra.mxu0 %v1054
    %1056 = vmatprep.subr.mxu0 0.0
    %v1057 = vand.u32 %v598, 4294901760
    %v1058 = vsub.f32 %v598, %v1057
    %1059 = vmatpush1.xpose.msra.mxu0 %v1058
    %1060 = vmatprep.subr.mxu0 0.0
    %v1061 = vand.u32 %v601, 4294901760
    %v1062 = vsub.f32 %v601, %v1061
    %1063 = vmatpush1.xpose.msra.mxu0 %v1062
    %1064 = vmatprep.subr.mxu0 0.0
    %v1065 = vand.u32 %v604, 4294901760
    %v1066 = vsub.f32 %v604, %v1065
    %1067 = vmatpush1.xpose.msra.mxu0 %v1066
    %1068 = vmatprep.subr.mxu0 0.0
    %v1069 = vand.u32 %v607, 4294901760
    %v1070 = vsub.f32 %v607, %v1069
    %1071 = vmatpush1.xpose.msra.mxu0 %v1070
    %1072 = vmatprep.subr.mxu0 0.0
    %v1073 = vand.u32 %v610, 4294901760
    %v1074 = vsub.f32 %v610, %v1073
    %1075 = vmatpush1.xpose.msra.mxu0 %v1074
    %1076 = vmatprep.subr.mxu0 0.0
    %v1077 = vand.u32 %v613, 4294901760
    %v1078 = vsub.f32 %v613, %v1077
    %1079 = vmatpush1.xpose.msra.mxu0 %v1078
    %1080 = vmatprep.subr.mxu0 0.0
    %v1081 = vand.u32 %v616, 4294901760
    %v1082 = vsub.f32 %v616, %v1081
    %1083 = vmatpush1.xpose.msra.mxu0 %v1082
    %1084 = vmatprep.subr.mxu0 0.0
    %v1085 = vand.u32 %v619, 4294901760
    %v1086 = vsub.f32 %v619, %v1085
    %1087 = vmatpush1.xpose.msra.mxu0 %v1086
    %1088 = vmatprep.subr.mxu0 0.0
    %v1089 = vand.u32 %v622, 4294901760
    %v1090 = vsub.f32 %v622, %v1089
    %1091 = vmatpush1.xpose.msra.mxu0 %v1090
    %1092 = vmatprep.subr.mxu0 0.0
    %v1093 = vand.u32 %v625, 4294901760
    %v1094 = vsub.f32 %v625, %v1093
    %1095 = vmatpush1.xpose.msra.mxu0 %v1094
    %1096 = vmatprep.subr.mxu0 0.0
    %v1097 = vand.u32 %v628, 4294901760
    %v1098 = vsub.f32 %v628, %v1097
    %1099 = vmatpush1.xpose.msra.mxu0 %v1098
    %1100 = vmatprep.subr.mxu0 0.0
    %v1101 = vand.u32 %v631, 4294901760
    %v1102 = vsub.f32 %v631, %v1101
    %1103 = vmatpush1.xpose.msra.mxu0 %v1102
    %1104 = vmatprep.subr.mxu0 0.0
    %v1105 = vand.u32 %v634, 4294901760
    %v1106 = vsub.f32 %v634, %v1105
    %1107 = vmatpush1.xpose.msra.mxu0 %v1106
    %1108 = vmatprep.subr.mxu0 0.0
    %v1109 = vand.u32 %v637, 4294901760
    %v1110 = vsub.f32 %v637, %v1109
    %1111 = vmatpush1.xpose.msra.mxu0 %v1110
    %1112 = vmatprep.subr.mxu0 0.0
    %v1113 = vand.u32 %v640, 4294901760
    %v1114 = vsub.f32 %v640, %v1113
    %1115 = vmatpush1.xpose.msra.mxu0 %v1114
    %1116 = vmatprep.subr.mxu0 0.0
    %v1117 = vand.u32 %v643, 4294901760
    %v1118 = vsub.f32 %v643, %v1117
    %1119 = vmatpush1.xpose.msra.mxu0 %v1118
    %1120 = vmatprep.subr.mxu0 0.0
    %v1121 = vand.u32 %v646, 4294901760
    %v1122 = vsub.f32 %v646, %v1121
    %1123 = vmatpush1.xpose.msra.mxu0 %v1122
    %1124 = vmatprep.subr.mxu0 0.0
    %v1125 = vand.u32 %v649, 4294901760
    %v1126 = vsub.f32 %v649, %v1125
    %1127 = vmatpush1.xpose.msra.mxu0 %v1126
    %1128 = vmatprep.subr.mxu0 0.0
    %v1129 = vand.u32 %v652, 4294901760
    %v1130 = vsub.f32 %v652, %v1129
    %1131 = vmatpush1.xpose.msra.mxu0 %v1130
    %1132 = vmatprep.subr.mxu0 0.0
    %v1133 = vand.u32 %v655, 4294901760
    %v1134 = vsub.f32 %v655, %v1133
    %1135 = vmatpush1.xpose.msra.mxu0 %v1134
    %1136 = vmatprep.subr.mxu0 0.0
    %v1137 = vand.u32 %v658, 4294901760
    %v1138 = vsub.f32 %v658, %v1137
    %1139 = vmatpush1.xpose.msra.mxu0 %v1138
    %1140 = vmatprep.subr.mxu0 0.0
    %v1141 = vand.u32 %v661, 4294901760
    %v1142 = vsub.f32 %v661, %v1141
    %1143 = vmatpush1.xpose.msra.mxu0 %v1142
    %1144 = vmatprep.subr.mxu0 0.0
    %v1145 = vand.u32 %v664, 4294901760
    %v1146 = vsub.f32 %v664, %v1145
    %1147 = vmatpush1.xpose.msra.mxu0 %v1146
    %1148 = vmatprep.subr.mxu0 0.0
    %v1149 = vand.u32 %v667, 4294901760
    %v1150 = vsub.f32 %v667, %v1149
    %1151 = vmatpush1.xpose.msra.mxu0 %v1150
    %1152 = vmatprep.subr.mxu0 0.0
    %v1153 = vand.u32 %v670, 4294901760
    %v1154 = vsub.f32 %v670, %v1153
    %1155 = vmatpush1.xpose.msra.mxu0 %v1154
    %1156 = vmatprep.subr.mxu0 0.0
    %v1157 = vand.u32 %v673, 4294901760
    %v1158 = vsub.f32 %v673, %v1157
    %1159 = vmatpush1.xpose.msra.mxu0 %v1158
    %1160 = vmatprep.subr.mxu0 0.0
    %v1161 = vand.u32 %v676, 4294901760
    %v1162 = vsub.f32 %v676, %v1161
    %1163 = vmatpush1.xpose.msra.mxu0 %v1162
    %1164 = vmatprep.mubr.f32.mxu0 0.0
    %v1165 = vand.u32 %v577, 4294901760
    %v1166 = vsub.f32 %v577, %v1165
    %1167 = vmatmul.mubr.f32.gmra.mrb[0].mxu0 %v1166
    %v1168 = vpop.f32.mrb[0].mxu0
    %v1169 = vadd.f32 %v1025, %v1168
    %v1170 = vpop.f32.mrb[0].mxu0
    %v1171 = vadd.f32 %v1027, %v1170
    %1172 = vmatprep.mubr.f32.mxu0 0.0
    %v1173 = vand.u32 %v580, 4294901760
    %v1174 = vsub.f32 %v580, %v1173
    %1175 = vmatmul.mubr.f32.gmra.mrb[0].mxu0 %v1174
    %v1176 = vpop.f32.mrb[0].mxu0
    %v1177 = vadd.f32 %v1032, %v1176
    %v1178 = vpop.f32.mrb[0].mxu0
    %v1179 = vadd.f32 %v1034, %v1178
    %1180 = vdwg.mxu0
    %1181 = vmatprep.subr.mxu0 0.0
    %v1182 = vand.u32 %v583, 4294901760
    %1183 = vmatpush1.xpose.msra.mxu0 %v1182
    %1184 = vmatprep.subr.mxu0 0.0
    %v1185 = vand.u32 %v586, 4294901760
    %1186 = vmatpush1.xpose.msra.mxu0 %v1185
    %1187 = vmatprep.subr.mxu0 0.0
    %v1188 = vand.u32 %v589, 4294901760
    %1189 = vmatpush1.xpose.msra.mxu0 %v1188
    %1190 = vmatprep.subr.mxu0 0.0
    %v1191 = vand.u32 %v592, 4294901760
    %1192 = vmatpush1.xpose.msra.mxu0 %v1191
    %1193 = vmatprep.subr.mxu0 0.0
    %v1194 = vand.u32 %v595, 4294901760
    %1195 = vmatpush1.xpose.msra.mxu0 %v1194
    %1196 = vmatprep.subr.mxu0 0.0
    %v1197 = vand.u32 %v598, 4294901760
    %1198 = vmatpush1.xpose.msra.mxu0 %v1197
    %1199 = vmatprep.subr.mxu0 0.0
    %v1200 = vand.u32 %v601, 4294901760
    %1201 = vmatpush1.xpose.msra.mxu0 %v1200
    %1202 = vmatprep.subr.mxu0 0.0
    %v1203 = vand.u32 %v604, 4294901760
    %1204 = vmatpush1.xpose.msra.mxu0 %v1203
    %1205 = vmatprep.subr.mxu0 0.0
    %v1206 = vand.u32 %v607, 4294901760
    %1207 = vmatpush1.xpose.msra.mxu0 %v1206
    %1208 = vmatprep.subr.mxu0 0.0
    %v1209 = vand.u32 %v610, 4294901760
    %1210 = vmatpush1.xpose.msra.mxu0 %v1209
    %1211 = vmatprep.subr.mxu0 0.0
    %v1212 = vand.u32 %v613, 4294901760
    %1213 = vmatpush1.xpose.msra.mxu0 %v1212
    %1214 = vmatprep.subr.mxu0 0.0
    %v1215 = vand.u32 %v616, 4294901760
    %1216 = vmatpush1.xpose.msra.mxu0 %v1215
    %1217 = vmatprep.subr.mxu0 0.0
    %v1218 = vand.u32 %v619, 4294901760
    %1219 = vmatpush1.xpose.msra.mxu0 %v1218
    %1220 = vmatprep.subr.mxu0 0.0
    %v1221 = vand.u32 %v622, 4294901760
    %1222 = vmatpush1.xpose.msra.mxu0 %v1221
    %1223 = vmatprep.subr.mxu0 0.0
    %v1224 = vand.u32 %v625, 4294901760
    %1225 = vmatpush1.xpose.msra.mxu0 %v1224
    %1226 = vmatprep.subr.mxu0 0.0
    %v1227 = vand.u32 %v628, 4294901760
    %1228 = vmatpush1.xpose.msra.mxu0 %v1227
    %1229 = vmatprep.subr.mxu0 0.0
    %v1230 = vand.u32 %v631, 4294901760
    %1231 = vmatpush1.xpose.msra.mxu0 %v1230
    %1232 = vmatprep.subr.mxu0 0.0
    %v1233 = vand.u32 %v634, 4294901760
    %1234 = vmatpush1.xpose.msra.mxu0 %v1233
    %1235 = vmatprep.subr.mxu0 0.0
    %v1236 = vand.u32 %v637, 4294901760
    %1237 = vmatpush1.xpose.msra.mxu0 %v1236
    %1238 = vmatprep.subr.mxu0 0.0
    %v1239 = vand.u32 %v640, 4294901760
    %1240 = vmatpush1.xpose.msra.mxu0 %v1239
    %1241 = vmatprep.subr.mxu0 0.0
    %v1242 = vand.u32 %v643, 4294901760
    %1243 = vmatpush1.xpose.msra.mxu0 %v1242
    %1244 = vmatprep.subr.mxu0 0.0
    %v1245 = vand.u32 %v646, 4294901760
    %1246 = vmatpush1.xpose.msra.mxu0 %v1245
    %1247 = vmatprep.subr.mxu0 0.0
    %v1248 = vand.u32 %v649, 4294901760
    %1249 = vmatpush1.xpose.msra.mxu0 %v1248
    %1250 = vmatprep.subr.mxu0 0.0
    %v1251 = vand.u32 %v652, 4294901760
    %1252 = vmatpush1.xpose.msra.mxu0 %v1251
    %1253 = vmatprep.subr.mxu0 0.0
    %v1254 = vand.u32 %v655, 4294901760
    %1255 = vmatpush1.xpose.msra.mxu0 %v1254
    %1256 = vmatprep.subr.mxu0 0.0
    %v1257 = vand.u32 %v658, 4294901760
    %1258 = vmatpush1.xpose.msra.mxu0 %v1257
    %1259 = vmatprep.subr.mxu0 0.0
    %v1260 = vand.u32 %v661, 4294901760
    %1261 = vmatpush1.xpose.msra.mxu0 %v1260
    %1262 = vmatprep.subr.mxu0 0.0
    %v1263 = vand.u32 %v664, 4294901760
    %1264 = vmatpush1.xpose.msra.mxu0 %v1263
    %1265 = vmatprep.subr.mxu0 0.0
    %v1266 = vand.u32 %v667, 4294901760
    %1267 = vmatpush1.xpose.msra.mxu0 %v1266
    %1268 = vmatprep.subr.mxu0 0.0
    %v1269 = vand.u32 %v670, 4294901760
    %1270 = vmatpush1.xpose.msra.mxu0 %v1269
    %1271 = vmatprep.subr.mxu0 0.0
    %v1272 = vand.u32 %v673, 4294901760
    %1273 = vmatpush1.xpose.msra.mxu0 %v1272
    %1274 = vmatprep.subr.mxu0 0.0
    %v1275 = vand.u32 %v676, 4294901760
    %1276 = vmatpush1.xpose.msra.mxu0 %v1275
    %1277 = vmatprep.mubr.f32.mxu0 0.0
    %v1278 = vand.u32 %v577, 4294901760
    %v1279 = vsub.f32 %v577, %v1278
    %v1280 = vand.u32 %v1279, 4294901760
    %1281 = vmatmul.mubr.f32.gmra.mrb[0].mxu0 %v1280
    %v1282 = vpop.f32.mrb[0].mxu0
    %v1283 = vadd.f32 %v1169, %v1282
    %v1284 = vpop.f32.mrb[0].mxu0
    %v1285 = vadd.f32 %v1171, %v1284
    %1286 = vmatprep.mubr.f32.mxu0 0.0
    %v1287 = vand.u32 %v580, 4294901760
    %v1288 = vsub.f32 %v580, %v1287
    %v1289 = vand.u32 %v1288, 4294901760
    %1290 = vmatmul.mubr.f32.gmra.mrb[0].mxu0 %v1289
    %v1291 = vpop.f32.mrb[0].mxu0
    %v1292 = vadd.f32 %v1177, %v1291
    %v1293 = vpop.f32.mrb[0].mxu0
    %v1294 = vadd.f32 %v1179, %v1293
    %1295 = vdwg.mxu0
    %1296 = vmatprep.subr.mxu0 0.0
    %v1297 = vand.u32 %v583, 4294901760
    %v1298 = vsub.f32 %v583, %v1297
    %v1299 = vand.u32 %v1298, 4294901760
    %1300 = vmatpush1.xpose.msra.mxu0 %v1299
    %1301 = vmatprep.subr.mxu0 0.0
    %v1302 = vand.u32 %v586, 4294901760
    %v1303 = vsub.f32 %v586, %v1302
    %v1304 = vand.u32 %v1303, 4294901760
    %1305 = vmatpush1.xpose.msra.mxu0 %v1304
    %1306 = vmatprep.subr.mxu0 0.0
    %v1307 = vand.u32 %v589, 4294901760
    %v1308 = vsub.f32 %v589, %v1307
    %v1309 = vand.u32 %v1308, 4294901760
    %1310 = vmatpush1.xpose.msra.mxu0 %v1309
    %1311 = vmatprep.subr.mxu0 0.0
    %v1312 = vand.u32 %v592, 4294901760
    %v1313 = vsub.f32 %v592, %v1312
    %v1314 = vand.u32 %v1313, 4294901760
    %1315 = vmatpush1.xpose.msra.mxu0 %v1314
    %1316 = vmatprep.subr.mxu0 0.0
    %v1317 = vand.u32 %v595, 4294901760
    %v1318 = vsub.f32 %v595, %v1317
    %v1319 = vand.u32 %v1318, 4294901760
    %1320 = vmatpush1.xpose.msra.mxu0 %v1319
    %1321 = vmatprep.subr.mxu0 0.0
    %v1322 = vand.u32 %v598, 4294901760
    %v1323 = vsub.f32 %v598, %v1322
    %v1324 = vand.u32 %v1323, 4294901760
    %1325 = vmatpush1.xpose.msra.mxu0 %v1324
    %1326 = vmatprep.subr.mxu0 0.0
    %v1327 = vand.u32 %v601, 4294901760
    %v1328 = vsub.f32 %v601, %v1327
    %v1329 = vand.u32 %v1328, 4294901760
    %1330 = vmatpush1.xpose.msra.mxu0 %v1329
    %1331 = vmatprep.subr.mxu0 0.0
    %v1332 = vand.u32 %v604, 4294901760
    %v1333 = vsub.f32 %v604, %v1332
    %v1334 = vand.u32 %v1333, 4294901760
    %1335 = vmatpush1.xpose.msra.mxu0 %v1334
    %1336 = vmatprep.subr.mxu0 0.0
    %v1337 = vand.u32 %v607, 4294901760
    %v1338 = vsub.f32 %v607, %v1337
    %v1339 = vand.u32 %v1338, 4294901760
    %1340 = vmatpush1.xpose.msra.mxu0 %v1339
    %1341 = vmatprep.subr.mxu0 0.0
    %v1342 = vand.u32 %v610, 4294901760
    %v1343 = vsub.f32 %v610, %v1342
    %v1344 = vand.u32 %v1343, 4294901760
    %1345 = vmatpush1.xpose.msra.mxu0 %v1344
    %1346 = vmatprep.subr.mxu0 0.0
    %v1347 = vand.u32 %v613, 4294901760
    %v1348 = vsub.f32 %v613, %v1347
    %v1349 = vand.u32 %v1348, 4294901760
    %1350 = vmatpush1.xpose.msra.mxu0 %v1349
    %1351 = vmatprep.subr.mxu0 0.0
    %v1352 = vand.u32 %v616, 4294901760
    %v1353 = vsub.f32 %v616, %v1352
    %v1354 = vand.u32 %v1353, 4294901760
    %1355 = vmatpush1.xpose.msra.mxu0 %v1354
    %1356 = vmatprep.subr.mxu0 0.0
    %v1357 = vand.u32 %v619, 4294901760
    %v1358 = vsub.f32 %v619, %v1357
    %v1359 = vand.u32 %v1358, 4294901760
    %1360 = vmatpush1.xpose.msra.mxu0 %v1359
    %1361 = vmatprep.subr.mxu0 0.0
    %v1362 = vand.u32 %v622, 4294901760
    %v1363 = vsub.f32 %v622, %v1362
    %v1364 = vand.u32 %v1363, 4294901760
    %1365 = vmatpush1.xpose.msra.mxu0 %v1364
    %1366 = vmatprep.subr.mxu0 0.0
    %v1367 = vand.u32 %v625, 4294901760
    %v1368 = vsub.f32 %v625, %v1367
    %v1369 = vand.u32 %v1368, 4294901760
    %1370 = vmatpush1.xpose.msra.mxu0 %v1369
    %1371 = vmatprep.subr.mxu0 0.0
    %v1372 = vand.u32 %v628, 4294901760
    %v1373 = vsub.f32 %v628, %v1372
    %v1374 = vand.u32 %v1373, 4294901760
    %1375 = vmatpush1.xpose.msra.mxu0 %v1374
    %1376 = vmatprep.subr.mxu0 0.0
    %v1377 = vand.u32 %v631, 4294901760
    %v1378 = vsub.f32 %v631, %v1377
    %v1379 = vand.u32 %v1378, 4294901760
    %1380 = vmatpush1.xpose.msra.mxu0 %v1379
    %1381 = vmatprep.subr.mxu0 0.0
    %v1382 = vand.u32 %v634, 4294901760
    %v1383 = vsub.f32 %v634, %v1382
    %v1384 = vand.u32 %v1383, 4294901760
    %1385 = vmatpush1.xpose.msra.mxu0 %v1384
    %1386 = vmatprep.subr.mxu0 0.0
    %v1387 = vand.u32 %v637, 4294901760
    %v1388 = vsub.f32 %v637, %v1387
    %v1389 = vand.u32 %v1388, 4294901760
    %1390 = vmatpush1.xpose.msra.mxu0 %v1389
    %1391 = vmatprep.subr.mxu0 0.0
    %v1392 = vand.u32 %v640, 4294901760
    %v1393 = vsub.f32 %v640, %v1392
    %v1394 = vand.u32 %v1393, 4294901760
    %1395 = vmatpush1.xpose.msra.mxu0 %v1394
    %1396 = vmatprep.subr.mxu0 0.0
    %v1397 = vand.u32 %v643, 4294901760
    %v1398 = vsub.f32 %v643, %v1397
    %v1399 = vand.u32 %v1398, 4294901760
    %1400 = vmatpush1.xpose.msra.mxu0 %v1399
    %1401 = vmatprep.subr.mxu0 0.0
    %v1402 = vand.u32 %v646, 4294901760
    %v1403 = vsub.f32 %v646, %v1402
    %v1404 = vand.u32 %v1403, 4294901760
    %1405 = vmatpush1.xpose.msra.mxu0 %v1404
    %1406 = vmatprep.subr.mxu0 0.0
    %v1407 = vand.u32 %v649, 4294901760
    %v1408 = vsub.f32 %v649, %v1407
    %v1409 = vand.u32 %v1408, 4294901760
    %1410 = vmatpush1.xpose.msra.mxu0 %v1409
    %1411 = vmatprep.subr.mxu0 0.0
    %v1412 = vand.u32 %v652, 4294901760
    %v1413 = vsub.f32 %v652, %v1412
    %v1414 = vand.u32 %v1413, 4294901760
    %1415 = vmatpush1.xpose.msra.mxu0 %v1414
    %1416 = vmatprep.subr.mxu0 0.0
    %v1417 = vand.u32 %v655, 4294901760
    %v1418 = vsub.f32 %v655, %v1417
    %v1419 = vand.u32 %v1418, 4294901760
    %1420 = vmatpush1.xpose.msra.mxu0 %v1419
    %1421 = vmatprep.subr.mxu0 0.0
    %v1422 = vand.u32 %v658, 4294901760
    %v1423 = vsub.f32 %v658, %v1422
    %v1424 = vand.u32 %v1423, 4294901760
    %1425 = vmatpush1.xpose.msra.mxu0 %v1424
    %1426 = vmatprep.subr.mxu0 0.0
    %v1427 = vand.u32 %v661, 4294901760
    %v1428 = vsub.f32 %v661, %v1427
    %v1429 = vand.u32 %v1428, 4294901760
    %1430 = vmatpush1.xpose.msra.mxu0 %v1429
    %1431 = vmatprep.subr.mxu0 0.0
    %v1432 = vand.u32 %v664, 4294901760
    %v1433 = vsub.f32 %v664, %v1432
    %v1434 = vand.u32 %v1433, 4294901760
    %1435 = vmatpush1.xpose.msra.mxu0 %v1434
    %1436 = vmatprep.subr.mxu0 0.0
    %v1437 = vand.u32 %v667, 4294901760
    %v1438 = vsub.f32 %v667, %v1437
    %v1439 = vand.u32 %v1438, 4294901760
    %1440 = vmatpush1.xpose.msra.mxu0 %v1439
    %1441 = vmatprep.subr.mxu0 0.0
    %v1442 = vand.u32 %v670, 4294901760
    %v1443 = vsub.f32 %v670, %v1442
    %v1444 = vand.u32 %v1443, 4294901760
    %1445 = vmatpush1.xpose.msra.mxu0 %v1444
    %1446 = vmatprep.subr.mxu0 0.0
    %v1447 = vand.u32 %v673, 4294901760
    %v1448 = vsub.f32 %v673, %v1447
    %v1449 = vand.u32 %v1448, 4294901760
    %1450 = vmatpush1.xpose.msra.mxu0 %v1449
    %1451 = vmatprep.subr.mxu0 0.0
    %v1452 = vand.u32 %v676, 4294901760
    %v1453 = vsub.f32 %v676, %v1452
    %v1454 = vand.u32 %v1453, 4294901760
    %1455 = vmatpush1.xpose.msra.mxu0 %v1454
    %1456 = vmatprep.mubr.f32.mxu0 0.0
    %v1457 = vand.u32 %v577, 4294901760
    %1458 = vmatmul.mubr.f32.gmra.mrb[0].mxu0 %v1457
    %v1459 = vpop.f32.mrb[0].mxu0
    %v1460 = vadd.f32 %v1283, %v1459
    %v1461 = vpop.f32.mrb[0].mxu0
    %v1462 = vadd.f32 %v1285, %v1461
    %1463 = vmatprep.mubr.f32.mxu0 0.0
    %v1464 = vand.u32 %v580, 4294901760
    %1465 = vmatmul.mubr.f32.gmra.mrb[0].mxu0 %v1464
    %v1466 = vpop.f32.mrb[0].mxu0
    %v1467 = vadd.f32 %v1292, %v1466
    %v1468 = vpop.f32.mrb[0].mxu0
    %v1469 = vadd.f32 %v1294, %v1468
    %1470 = vdwg.mxu0
    %1471 = vmatprep.subr.mxu0 0.0
    %v1472 = vand.u32 %v583, 4294901760
    %1473 = vmatpush1.xpose.msra.mxu0 %v1472
    %1474 = vmatprep.subr.mxu0 0.0
    %v1475 = vand.u32 %v586, 4294901760
    %1476 = vmatpush1.xpose.msra.mxu0 %v1475
    %1477 = vmatprep.subr.mxu0 0.0
    %v1478 = vand.u32 %v589, 4294901760
    %1479 = vmatpush1.xpose.msra.mxu0 %v1478
    %1480 = vmatprep.subr.mxu0 0.0
    %v1481 = vand.u32 %v592, 4294901760
    %1482 = vmatpush1.xpose.msra.mxu0 %v1481
    %1483 = vmatprep.subr.mxu0 0.0
    %v1484 = vand.u32 %v595, 4294901760
    %1485 = vmatpush1.xpose.msra.mxu0 %v1484
    %1486 = vmatprep.subr.mxu0 0.0
    %v1487 = vand.u32 %v598, 4294901760
    %1488 = vmatpush1.xpose.msra.mxu0 %v1487
    %1489 = vmatprep.subr.mxu0 0.0
    %v1490 = vand.u32 %v601, 4294901760
    %1491 = vmatpush1.xpose.msra.mxu0 %v1490
    %1492 = vmatprep.subr.mxu0 0.0
    %v1493 = vand.u32 %v604, 4294901760
    %1494 = vmatpush1.xpose.msra.mxu0 %v1493
    %1495 = vmatprep.subr.mxu0 0.0
    %v1496 = vand.u32 %v607, 4294901760
    %1497 = vmatpush1.xpose.msra.mxu0 %v1496
    %1498 = vmatprep.subr.mxu0 0.0
    %v1499 = vand.u32 %v610, 4294901760
    %1500 = vmatpush1.xpose.msra.mxu0 %v1499
    %1501 = vmatprep.subr.mxu0 0.0
    %v1502 = vand.u32 %v613, 4294901760
    %1503 = vmatpush1.xpose.msra.mxu0 %v1502
    %1504 = vmatprep.subr.mxu0 0.0
    %v1505 = vand.u32 %v616, 4294901760
    %1506 = vmatpush1.xpose.msra.mxu0 %v1505
    %1507 = vmatprep.subr.mxu0 0.0
    %v1508 = vand.u32 %v619, 4294901760
    %1509 = vmatpush1.xpose.msra.mxu0 %v1508
    %1510 = vmatprep.subr.mxu0 0.0
    %v1511 = vand.u32 %v622, 4294901760
    %1512 = vmatpush1.xpose.msra.mxu0 %v1511
    %1513 = vmatprep.subr.mxu0 0.0
    %v1514 = vand.u32 %v625, 4294901760
    %1515 = vmatpush1.xpose.msra.mxu0 %v1514
    %1516 = vmatprep.subr.mxu0 0.0
    %v1517 = vand.u32 %v628, 4294901760
    %1518 = vmatpush1.xpose.msra.mxu0 %v1517
    %1519 = vmatprep.subr.mxu0 0.0
    %v1520 = vand.u32 %v631, 4294901760
    %1521 = vmatpush1.xpose.msra.mxu0 %v1520
    %1522 = vmatprep.subr.mxu0 0.0
    %v1523 = vand.u32 %v634, 4294901760
    %1524 = vmatpush1.xpose.msra.mxu0 %v1523
    %1525 = vmatprep.subr.mxu0 0.0
    %v1526 = vand.u32 %v637, 4294901760
    %1527 = vmatpush1.xpose.msra.mxu0 %v1526
    %1528 = vmatprep.subr.mxu0 0.0
    %v1529 = vand.u32 %v640, 4294901760
    %1530 = vmatpush1.xpose.msra.mxu0 %v1529
    %1531 = vmatprep.subr.mxu0 0.0
    %v1532 = vand.u32 %v643, 4294901760
    %1533 = vmatpush1.xpose.msra.mxu0 %v1532
    %1534 = vmatprep.subr.mxu0 0.0
    %v1535 = vand.u32 %v646, 4294901760
    %1536 = vmatpush1.xpose.msra.mxu0 %v1535
    %1537 = vmatprep.subr.mxu0 0.0
    %v1538 = vand.u32 %v649, 4294901760
    %1539 = vmatpush1.xpose.msra.mxu0 %v1538
    %1540 = vmatprep.subr.mxu0 0.0
    %v1541 = vand.u32 %v652, 4294901760
    %1542 = vmatpush1.xpose.msra.mxu0 %v1541
    %1543 = vmatprep.subr.mxu0 0.0
    %v1544 = vand.u32 %v655, 4294901760
    %1545 = vmatpush1.xpose.msra.mxu0 %v1544
    %1546 = vmatprep.subr.mxu0 0.0
    %v1547 = vand.u32 %v658, 4294901760
    %1548 = vmatpush1.xpose.msra.mxu0 %v1547
    %1549 = vmatprep.subr.mxu0 0.0
    %v1550 = vand.u32 %v661, 4294901760
    %1551 = vmatpush1.xpose.msra.mxu0 %v1550
    %1552 = vmatprep.subr.mxu0 0.0
    %v1553 = vand.u32 %v664, 4294901760
    %1554 = vmatpush1.xpose.msra.mxu0 %v1553
    %1555 = vmatprep.subr.mxu0 0.0
    %v1556 = vand.u32 %v667, 4294901760
    %1557 = vmatpush1.xpose.msra.mxu0 %v1556
    %1558 = vmatprep.subr.mxu0 0.0
    %v1559 = vand.u32 %v670, 4294901760
    %1560 = vmatpush1.xpose.msra.mxu0 %v1559
    %1561 = vmatprep.subr.mxu0 0.0
    %v1562 = vand.u32 %v673, 4294901760
    %1563 = vmatpush1.xpose.msra.mxu0 %v1562
    %1564 = vmatprep.subr.mxu0 0.0
    %v1565 = vand.u32 %v676, 4294901760
    %1566 = vmatpush1.xpose.msra.mxu0 %v1565
    %1567 = vmatprep.mubr.f32.mxu0 0.0
    %v1568 = vand.u32 %v577, 4294901760
    %1569 = vmatmul.mubr.f32.gmra.mrb[0].mxu0 %v1568
    %v1570 = vpop.f32.mrb[0].mxu0
    %v1571 = vadd.f32 %v1460, %v1570
    %v1572 = vpop.f32.mrb[0].mxu0
    %v1573 = vadd.f32 %v1462, %v1572
    %1574 = vmatprep.mubr.f32.mxu0 0.0
    %v1575 = vand.u32 %v580, 4294901760
    %1576 = vmatmul.mubr.f32.gmra.mrb[0].mxu0 %v1575
    %v1577 = vpop.f32.mrb[0].mxu0
    %v1578 = vadd.f32 %v1467, %v1577
    %v1579 = vpop.f32.mrb[0].mxu0
    %v1580 = vadd.f32 %v1469, %v1579
    %1581 = vdwg.mxu0
    %1582 = vst [vmem:[#allocation7] sm:$0xff] %v1571
    %1583 = vst [vmem:[#allocation7 + $0x8] sm:$0xff] %v1573
    %1584 = vst [vmem:[#allocation7 + $0x10] sm:$0xff] %v1578
    %1585 = vst [vmem:[#allocation7 + $0x18] sm:$0xff] %v1580
    // Predicated region
    $region26: #{tpu_custom_call.1} parent=1 // pred_check
      _
    $region27: #{tpu_custom_call.1} parent=1 // pred_check_branch
      %1587 = sbr.rel (0) target = $region29
    $region28: #{tpu_custom_call.1} parent=1 // pred_region
      %s1589 = ssub.s32 512, 512
      %1590 = vsyncadd [#allocation4], %s1589
      %s1591 = sshll.u32 [#allocation7], 4
      %s1592 = int_to_ptr.vmem [resolvable:$true] %s1591
      %1597 = dma.vmem_to_hbm [thread:$0]  %s1592, 512, %s4, [#allocation4], 256, 256, 16
    $region29: #{tpu_custom_call.1} parent=1 // pred_fallthru
      _
    // Predicated region
    $region30: #{tpu_custom_call.1} parent=1 // pred_check
      _
    $region31: #{tpu_custom_call.1} parent=1 // pred_check_branch
      %1599 = sbr.rel (0) target = $region33
    $region32: #{tpu_custom_call.1} parent=1 // pred_region
      %1600 = dma.done [#allocation4], 512
    $region33: #{tpu_custom_call.1} parent=1 // pred_fallthru
      _
    %1601 = vsyncpa [#allocation3], 1
    %1602 = vsyncpa [#allocation6], 1
    %1603 = vsyncpa [#allocation4], 1

</llo_original>
